<compile_context>
chip_gen: v7x
topology: tpu7x:2x2x1
jax: 0.10.0
libtpu: 0.0.40
codegen_flags: <defaults>
</compile_context>

<pallas_src>
import jax
import jax.numpy as jnp
from jax.experimental import pallas as pl
from jax.experimental.pallas import tpu as pltpu


def _ae_kernel(x_ref, w1_ref, b1_ref, w2_ref, b2_ref, o_ref):
    # x_ref:  (1, C_in, TP)   channels on sublanes, pixels on lanes
    # w1_ref: (C_hid, C_in)   encoder 1x1 conv weight (PyTorch (out, in) form)
    # b1_ref: (C_hid, 1)
    # w2_ref: (C_in, C_hid)   decoder 1x1 conv weight
    # b2_ref: (C_in, 1)
    # o_ref:  (1, C_in, TP)
    x = x_ref[0]                                                   # (C_in, TP)
    h = jnp.dot(w1_ref[...], x,
                preferred_element_type=jnp.float32,
                precision=jax.lax.Precision.HIGHEST)
    h = jnp.maximum(h + b1_ref[...], 0.0)                          # encoder ReLU
    y = jnp.dot(w2_ref[...], h,
                preferred_element_type=jnp.float32,
                precision=jax.lax.Precision.HIGHEST)
    y = y + b2_ref[...]
    o_ref[0] = y.astype(o_ref.dtype)


def _round_up(x, m):
    return ((x + m - 1) // m) * m


def _pick_pixel_tile(p, n, c_in, c_hid, act_itemsize,
                     tp_cap=2048, vmem_budget_bytes=12 << 20):
    """Fixed lane-dense pixel tile under a conservative per-step VMEM budget.

    The budget accounts for sublane padding (ceil(c/8)*8) of the activation
    tiles, double-buffered in/out blocks, and the f32 h/y intermediates.
    12 MiB sits well under every generation's scoped-VMEM default
    (16 MiB v5e, 32 MiB v6e/v7x), so no vmem_limit override is needed.
    """
    pad8 = lambda c: _round_up(c, 8)
    bytes_per_lane = (
        2 * 2 * pad8(c_in) * act_itemsize        # x + y blocks, 2 pipeline buffers each
        + (pad8(c_hid) + pad8(c_in)) * 4         # f32 intermediates h, y
    )
    tp = min(tp_cap, vmem_budget_bytes // bytes_per_lane)
    tp = max(128, (tp // 128) * 128)             # lane-dense (multiple of 128)
    tp = min(tp, _round_up(p, 128))              # never wider than the pixel extent
    # v7x megacore: try to give the (parallel) grid at least 2 steps.
    if n * pl.cdiv(p, tp) < 2 and p > 128:
        tp = max(128, _round_up(pl.cdiv(p, 2), 128))
    return tp


def autoencoder_1x1(x_nchw, w1, b1, w2, b2, *, tp_cap=2048):
    """x_nchw: (N, C_in, H, W).  w1: (C_hid, C_in), w2: (C_in, C_hid).

    Returns (N, C_in, H, W) in x_nchw.dtype."""
    n, c_in, hh, ww = x_nchw.shape
    c_hid = w1.shape[0]
    p = hh * ww

    # NCHW -> (N, C_in, H*W): contiguous collapse of trailing dims (free).
    x3 = x_nchw.reshape(n, c_in, p)

    act_itemsize = jnp.dtype(x_nchw.dtype).itemsize
    tp = _pick_pixel_tile(p, n, c_in, c_hid, act_itemsize, tp_cap=tp_cap)
    grid = (n, pl.cdiv(p, tp))                   # ragged last block is masked

    b1_2d = b1.reshape(c_hid, 1)
    b2_2d = b2.reshape(c_in, 1)

    m = n * p
    cost = pl.CostEstimate(
        flops=4 * m * c_in * c_hid,              # two matmuls: 2*M*K*N each
        transcendentals=0,
        bytes_accessed=2 * m * c_in * act_itemsize
        + (2 * c_in * c_hid + c_in + c_hid) * jnp.dtype(w1.dtype).itemsize,
    )

    out = pl.pallas_call(
        _ae_kernel,
        out_shape=jax.ShapeDtypeStruct((n, c_in, p), x_nchw.dtype),
        grid_spec=pltpu.PrefetchScalarGridSpec(
            num_scalar_prefetch=0,
            grid=grid,
            in_specs=[
                # activation tile: lane-dense pixel axis
                pl.BlockSpec((1, c_in, tp), lambda b, i: (b, 0, i)),
                # tiny invariant params: constant index_map -> VMEM-resident
                pl.BlockSpec((c_hid, c_in), lambda b, i: (0, 0)),  # W1
                pl.BlockSpec((c_hid, 1), lambda b, i: (0, 0)),     # b1
                pl.BlockSpec((c_in, c_hid), lambda b, i: (0, 0)),  # W2
                pl.BlockSpec((c_in, 1), lambda b, i: (0, 0)),      # b2
            ],
            out_specs=pl.BlockSpec((1, c_in, tp), lambda b, i: (b, 0, i)),
        ),
        compiler_params=pltpu.CompilerParams(
            dimension_semantics=("parallel", "parallel")),
        cost_estimate=cost,
    )(x3, w1, b1_2d, w2, b2_2d)

    # (N, C_in, H*W) -> NCHW (free reshape).
    return out.reshape(n, c_in, hh, ww)


def _reference(x_nchw, w1, b1, w2, b2):
    # Plain-JAX reference of the 1x1-conv autoencoder, NCHW-native.
    h = jnp.einsum("oc,nchw->nohw", w1, x_nchw,
                   precision=jax.lax.Precision.HIGHEST) + b1[None, :, None, None]
    h = jnp.maximum(h, 0.0)
    y = jnp.einsum("co,nohw->nchw", w2, h,
                   precision=jax.lax.Precision.HIGHEST) + b2[None, :, None, None]
    return y


if __name__ == "__main__":
    key = jax.random.PRNGKey(0)
    N, C_IN, S, C_HID = 2, 4, 16, 32   # batch=2, channels=4, spatial=16, hidden=32

    k_x, k_w1, k_b1, k_w2, k_b2 = jax.random.split(key, 5)
    x = jax.random.normal(k_x, (N, C_IN, S, S), dtype=jnp.float32)

    # Conv2d(out, in, 1, 1) weights stored as (out, in) matrices so the kernel
    # computes W @ X over the channel axis (NCHW-native).
    w1 = jax.random.normal(k_w1, (C_HID, C_IN), dtype=jnp.float32) * 0.1
    b1 = jax.random.normal(k_b1, (C_HID,), dtype=jnp.float32) * 0.1
    w2 = jax.random.normal(k_w2, (C_IN, C_HID), dtype=jnp.float32) * 0.1
    b2 = jax.random.normal(k_b2, (C_IN,), dtype=jnp.float32) * 0.1

    y = autoencoder_1x1(x, w1, b1, w2, b2)
    jax.block_until_ready(y)
    assert y.shape == x.shape
    assert jnp.allclose(y, _reference(x, w1, b1, w2, b2), atol=1e-5, rtol=1e-5)

    # Ragged-tile path: spatial extent whose pixel count is NOT a multiple of
    # 128 (17*17 = 289) exercises the cdiv grid + masked last block.
    x_r = jax.random.normal(jax.random.PRNGKey(1), (N, C_IN, 17, 17),
                            dtype=jnp.float32)
    y_r = autoencoder_1x1(x_r, w1, b1, w2, b2)
    jax.block_until_ready(y_r)
    assert y_r.shape == x_r.shape
    assert jnp.allclose(y_r, _reference(x_r, w1, b1, w2, b2),
                        atol=1e-5, rtol=1e-5)

    print("KERNEL_OK")
</pallas_src>

<mosaic_0001>
module attributes {stable_mosaic.version = 11 : i64} {
  func.func @_ae_kernel(%arg0: i32, %arg1: i32, %arg2: memref<1x4x256xf32, #tpu.memory_space<vmem>>, %arg3: memref<32x4xf32, #tpu.memory_space<vmem>>, %arg4: memref<32x1xf32, #tpu.memory_space<vmem>>, %arg5: memref<4x32xf32, #tpu.memory_space<vmem>>, %arg6: memref<4x1xf32, #tpu.memory_space<vmem>>, %arg7: memref<1x4x256xf32, #tpu.memory_space<vmem>>) attributes {dimension_semantics = [#tpu.dimension_semantics<parallel>, #tpu.dimension_semantics<parallel>], iteration_bounds = array<i64: 2, 1>, scalar_prefetch = 0 : i64, scratch_operands = 0 : i64, tpu.core_type = #tpu.core_type<tc>, window_params = [{transform_indices = @transform_0, window_bounds = array<i64: 1, 4, 256>}, {pipeline_mode = #tpu.pipeline_mode<synchronous>, transform_indices = @transform_1, window_bounds = array<i64: 32, 4>}, {pipeline_mode = #tpu.pipeline_mode<synchronous>, transform_indices = @transform_2, window_bounds = array<i64: 32, 1>}, {pipeline_mode = #tpu.pipeline_mode<synchronous>, transform_indices = @transform_3, window_bounds = array<i64: 4, 32>}, {pipeline_mode = #tpu.pipeline_mode<synchronous>, transform_indices = @transform_4, window_bounds = array<i64: 4, 1>}, {transform_indices = @transform_5, window_bounds = array<i64: 1, 4, 256>}]} {
    %c0 = arith.constant 0 : index
    %c0_0 = arith.constant 0 : index
    %c0_1 = arith.constant 0 : index
    %0 = vector.load %arg2[%c0, %c0_0, %c0_1] : memref<1x4x256xf32, #tpu.memory_space<vmem>>, vector<1x4x256xf32>
    %1 = vector.shape_cast %0 : vector<1x4x256xf32> to vector<4x256xf32>
    %c0_2 = arith.constant 0 : index
    %c0_3 = arith.constant 0 : index
    %2 = vector.load %arg3[%c0_2, %c0_3] : memref<32x4xf32, #tpu.memory_space<vmem>>, vector<32x4xf32>
    %cst = arith.constant dense<0.000000e+00> : vector<32x256xf32>
    %3 = tpu.matmul %2, %1, %cst {dimension_numbers = #tpu.dot_dimension_numbers<[1], [0], [0], [1], [0, 0, 1, 1], [], []>, precision = #tpu.contract_precision<fp32>} : vector<32x4xf32>, vector<4x256xf32>, vector<32x256xf32> -> vector<32x256xf32>
    %c0_4 = arith.constant 0 : index
    %c0_5 = arith.constant 0 : index
    %4 = vector.load %arg4[%c0_4, %c0_5] : memref<32x1xf32, #tpu.memory_space<vmem>>, vector<32x1xf32>
    %5 = vector.broadcast %4 : vector<32x1xf32> to vector<32x256xf32>
    %6 = arith.addf %3, %5 : vector<32x256xf32>
    %cst_6 = arith.constant 0.000000e+00 : f32
    %7 = vector.broadcast %cst_6 : f32 to vector<32x256xf32>
    %8 = arith.maximumf %6, %7 : vector<32x256xf32>
    %c0_7 = arith.constant 0 : index
    %c0_8 = arith.constant 0 : index
    %9 = vector.load %arg5[%c0_7, %c0_8] : memref<4x32xf32, #tpu.memory_space<vmem>>, vector<4x32xf32>
    %cst_9 = arith.constant dense<0.000000e+00> : vector<4x256xf32>
    %10 = tpu.matmul %9, %8, %cst_9 {dimension_numbers = #tpu.dot_dimension_numbers<[1], [0], [0], [1], [0, 0, 1, 1], [], []>, precision = #tpu.contract_precision<fp32>} : vector<4x32xf32>, vector<32x256xf32>, vector<4x256xf32> -> vector<4x256xf32>
    %c0_10 = arith.constant 0 : index
    %c0_11 = arith.constant 0 : index
    %11 = vector.load %arg6[%c0_10, %c0_11] : memref<4x1xf32, #tpu.memory_space<vmem>>, vector<4x1xf32>
    %12 = vector.broadcast %11 : vector<4x1xf32> to vector<4x256xf32>
    %13 = arith.addf %10, %12 : vector<4x256xf32>
    %c0_12 = arith.constant 0 : index
    %c0_13 = arith.constant 0 : index
    %c0_14 = arith.constant 0 : index
    %14 = vector.load %arg7[%c0_12, %c0_13, %c0_14] : memref<1x4x256xf32, #tpu.memory_space<vmem>>, vector<1x4x256xf32>
    %15 = vector.shape_cast %14 : vector<1x4x256xf32> to vector<4x256xf32>
    %16 = vector.shape_cast %13 : vector<4x256xf32> to vector<1x4x256xf32>
    tpu.vector_store %arg7[%c0_12, %c0_13, %c0_14], %16 {strides = array<i32>} : memref<1x4x256xf32, #tpu.memory_space<vmem>>, vector<1x4x256xf32>,
    return
  }
  func.func @transform_0(%arg0: i32, %arg1: i32) -> (i32, i32, i32) {
    %c0_i32 = arith.constant 0 : i32
    %c0_i32_0 = arith.constant 0 : i32
    return %arg0, %c0_i32, %arg1 : i32, i32, i32
  }
  func.func @transform_1(%arg0: i32, %arg1: i32) -> (i32, i32) {
    %c0_i32 = arith.constant 0 : i32
    %c0_i32_0 = arith.constant 0 : i32
    %c0_i32_1 = arith.constant 0 : i32
    return %c0_i32, %c0_i32_0 : i32, i32
  }
  func.func @transform_2(%arg0: i32, %arg1: i32) -> (i32, i32) {
    %c0_i32 = arith.constant 0 : i32
    %c0_i32_0 = arith.constant 0 : i32
    %c0_i32_1 = arith.constant 0 : i32
    return %c0_i32, %c0_i32_0 : i32, i32
  }
  func.func @transform_3(%arg0: i32, %arg1: i32) -> (i32, i32) {
    %c0_i32 = arith.constant 0 : i32
    %c0_i32_0 = arith.constant 0 : i32
    %c0_i32_1 = arith.constant 0 : i32
    return %c0_i32, %c0_i32_0 : i32, i32
  }
  func.func @transform_4(%arg0: i32, %arg1: i32) -> (i32, i32) {
    %c0_i32 = arith.constant 0 : i32
    %c0_i32_0 = arith.constant 0 : i32
    %c0_i32_1 = arith.constant 0 : i32
    return %c0_i32, %c0_i32_0 : i32, i32
  }
  func.func @transform_5(%arg0: i32, %arg1: i32) -> (i32, i32, i32) {
    %c0_i32 = arith.constant 0 : i32
    %c0_i32_0 = arith.constant 0 : i32
    return %arg0, %c0_i32, %arg1 : i32, i32, i32
  }
}

</mosaic_0001>

<llo_original>
// kernel: tpu_custom_call.1
$region0: #{tpu_custom_call.1}
  #allocation0 [shape = 'u32[]', space=smem, size = 0x4, offset = 0x4, fixed_abs, tag = 'smem constant byte address 0x4 - core index']
  #allocation1 [shape = 'u32[144,128]{1,0:T(1,128)}', space=vmem, size = 0x12000, scoped, tag = 'internal scratch']
  %s0 = inlined_call_operand.vmem [shape: f32[2,4,256], index: 0, kind: input, shape index: {}]
  %s1 = inlined_call_operand.vmem [shape: f32[32,4], index: 1, kind: input, shape index: {}]
  %s2 = inlined_call_operand.vmem [shape: f32[32,1], index: 2, kind: input, shape index: {}]
  %s3 = inlined_call_operand.vmem [shape: f32[4,32], index: 3, kind: input, shape index: {}]
  %s4 = inlined_call_operand.vmem [shape: f32[4,1], index: 4, kind: input, shape index: {}]
  %s5 = inlined_call_operand.hbm [shape: f32[2,4,256], index: 5, kind: output, shape index: {}]
  %s6 = sld [smem:[#allocation0]]
  $region53: #{tpu_custom_call.1} parent=0
    _
  %s8 = ssub.s32 1, %s6
  %s9 = scalar_select 0, %s8, %s6
  $region1: #{tpu_custom_call.1} parent=0
    #allocation2 [shape = 'u8[8192]{0}', space=vmem, size = 0x2000, scoped, tag = 'output window, operand 0']
    #allocation3 [shape = 's32[2]{0}', space=sflag, size = 0x8, scoped, tag = 'scoped memory for tpu_custom_call.1']
    %10 = vsyncpa [#allocation3], 0
    %s11 = scalar_lea.sflag [#allocation3], 1
    %12 = vsyncpa %s11, 0
    loop: start=0, step=1, limit=4
    $region2: #{tpu_custom_call.1} parent=1 // loop_pre_header
      _
    $region3: #{tpu_custom_call.1} parent=1 // loop_header
      %s14 = sphi 0, %s18
      %p15 = scmp.ge.s32.totalorder %s14, 4
      %s21 = sphi 0, %s33
      %s22 = sphi 0, %s29
      %s23 = sphi 0, %s21
      %s24 = sphi 0, %s22
      %s25 = sphi 0, %s23
      %s26 = sphi 0, %s24
      %s38 = sphi 0, %s40
      %s41 = sphi 0, %s38
      %s42 = sphi 0, %s41
      %s58 = sphi 0, %s42
      %s62 = sphi 0, %s62
      %s64 = sphi 0, %s62
      %s65 = sphi 0, %s64
      %s79 = sphi 0, %s65
      %s83 = sphi 0, %s83
      %s85 = sphi 0, %s83
      %s86 = sphi 0, %s85
      %s100 = sphi 0, %s86
      %s104 = sphi 0, %s104
      %s106 = sphi 0, %s104
      %s107 = sphi 0, %s106
      %s121 = sphi 0, %s107
      %s125 = sphi 0, %s125
      %s127 = sphi 0, %s125
      %s128 = sphi 0, %s127
      %s142 = sphi 0, %s128
      %s150 = sphi 0, %s152
      %s153 = sphi 0, %s150
      %s154 = sphi 0, %s153
      %s170 = sphi 0, %s154
    $region4: #{tpu_custom_call.1} parent=1 // loop_header_branch
      %17 = sbr.rel (%p15) target = $region8
    $region5: #{tpu_custom_call.1} parent=1 // loop_body
      %s19 = ssub.s32 %s14, 1
      %s20 = ssub.s32 %s14, 2
      %s27 = sadd.s32 1, %s22
      %p28 = scmp.ge.s32.totalorder %s27, 1
      %s29 = scalar_select %p28, 0, %s27
      %s30 = sadd.s32 1, %s21
      %s31 = scalar_select %p28, %s30, %s21
      %p32 = scmp.ge.s32.totalorder %s31, 2
      %s33 = scalar_select %p32, 0, %s31
      %s34 = ssub.s32 %s21, %s33
      %s35 = ssub.s32 %s22, %s29
      %s36 = sor.u32 %s34, %s35
      %p37 = scmp.eq.s32.totalorder %s36, 0
      %s39 = sadd.s32 %s38, 1
      %s40 = scalar_select %p37, %s38, %s39
      %p43 = pneg %p37
      %p44 = scmp.eq.s32.totalorder %s14, 1
      %p45 = por %p43, %p44
      %p46 = scmp.ne.s32.totalorder %s38, %s41
      %p47 = scmp.eq.s32.totalorder %s14, 0
      %p48 = por %p46, %p47
      %p49 = scmp.ne.s32.totalorder %s38, %s41
      %p50 = scmp.eq.s32.totalorder %s19, 1
      %p51 = por %p49, %p50
      %p52 = scmp.ne.s32.totalorder %s41, %s42
      %p53 = scmp.eq.s32.totalorder %s19, 0
      %p54 = por %p52, %p53
      %p55 = scmp.ne.s32.totalorder %s41, %s42
      %p56 = scmp.eq.s32.totalorder %s20, 1
      %p57 = por %p55, %p56
      %p59 = scmp.ne.s32.totalorder %s42, %s58
      %p60 = scmp.eq.s32.totalorder %s20, 0
      %p61 = por %p59, %p60
      %s63 = sadd.s32 %s62, 1
      %p66 = scmp.eq.s32.totalorder %s14, 1
      %p67 = scmp.ne.s32.totalorder %s62, %s64
      %p68 = scmp.eq.s32.totalorder %s14, 0
      %p69 = por %p67, %p68
      %p70 = scmp.ne.s32.totalorder %s62, %s64
      %p71 = scmp.eq.s32.totalorder %s19, 1
      %p72 = por %p70, %p71
      %p73 = scmp.ne.s32.totalorder %s64, %s65
      %p74 = scmp.eq.s32.totalorder %s19, 0
      %p75 = por %p73, %p74
      %p76 = scmp.ne.s32.totalorder %s64, %s65
      %p77 = scmp.eq.s32.totalorder %s20, 1
      %p78 = por %p76, %p77
      %p80 = scmp.ne.s32.totalorder %s65, %s79
      %p81 = scmp.eq.s32.totalorder %s20, 0
      %p82 = por %p80, %p81
      %s84 = sadd.s32 %s83, 1
      %p87 = scmp.eq.s32.totalorder %s14, 1
      %p88 = scmp.ne.s32.totalorder %s83, %s85
      %p89 = scmp.eq.s32.totalorder %s14, 0
      %p90 = por %p88, %p89
      %p91 = scmp.ne.s32.totalorder %s83, %s85
      %p92 = scmp.eq.s32.totalorder %s19, 1
      %p93 = por %p91, %p92
      %p94 = scmp.ne.s32.totalorder %s85, %s86
      %p95 = scmp.eq.s32.totalorder %s19, 0
      %p96 = por %p94, %p95
      %p97 = scmp.ne.s32.totalorder %s85, %s86
      %p98 = scmp.eq.s32.totalorder %s20, 1
      %p99 = por %p97, %p98
      %p101 = scmp.ne.s32.totalorder %s86, %s100
      %p102 = scmp.eq.s32.totalorder %s20, 0
      %p103 = por %p101, %p102
      %s105 = sadd.s32 %s104, 1
      %p108 = scmp.eq.s32.totalorder %s14, 1
      %p109 = scmp.ne.s32.totalorder %s104, %s106
      %p110 = scmp.eq.s32.totalorder %s14, 0
      %p111 = por %p109, %p110
      %p112 = scmp.ne.s32.totalorder %s104, %s106
      %p113 = scmp.eq.s32.totalorder %s19, 1
      %p114 = por %p112, %p113
      %p115 = scmp.ne.s32.totalorder %s106, %s107
      %p116 = scmp.eq.s32.totalorder %s19, 0
      %p117 = por %p115, %p116
      %p118 = scmp.ne.s32.totalorder %s106, %s107
      %p119 = scmp.eq.s32.totalorder %s20, 1
      %p120 = por %p118, %p119
      %p122 = scmp.ne.s32.totalorder %s107, %s121
      %p123 = scmp.eq.s32.totalorder %s20, 0
      %p124 = por %p122, %p123
      %s126 = sadd.s32 %s125, 1
      %p129 = scmp.eq.s32.totalorder %s14, 1
      %p130 = scmp.ne.s32.totalorder %s125, %s127
      %p131 = scmp.eq.s32.totalorder %s14, 0
      %p132 = por %p130, %p131
      %p133 = scmp.ne.s32.totalorder %s125, %s127
      %p134 = scmp.eq.s32.totalorder %s19, 1
      %p135 = por %p133, %p134
      %p136 = scmp.ne.s32.totalorder %s127, %s128
      %p137 = scmp.eq.s32.totalorder %s19, 0
      %p138 = por %p136, %p137
      %p139 = scmp.ne.s32.totalorder %s127, %s128
      %p140 = scmp.eq.s32.totalorder %s20, 1
      %p141 = por %p139, %p140
      %p143 = scmp.ne.s32.totalorder %s128, %s142
      %p144 = scmp.eq.s32.totalorder %s20, 0
      %p145 = por %p143, %p144
      %s146 = ssub.s32 %s21, %s33
      %s147 = ssub.s32 %s22, %s29
      %s148 = sor.u32 %s146, %s147
      %p149 = scmp.eq.s32.totalorder %s148, 0
      %s151 = sadd.s32 %s150, 1
      %s152 = scalar_select %p149, %s150, %s151
      %p155 = pneg %p149
      %p156 = scmp.eq.s32.totalorder %s14, 1
      %p157 = por %p155, %p156
      %p158 = scmp.ne.s32.totalorder %s150, %s153
      %p159 = scmp.eq.s32.totalorder %s14, 0
      %p160 = por %p158, %p159
      %p161 = scmp.ne.s32.totalorder %s150, %s153
      %p162 = scmp.eq.s32.totalorder %s19, 1
      %p163 = por %p161, %p162
      %p164 = scmp.ne.s32.totalorder %s153, %s154
      %p165 = scmp.eq.s32.totalorder %s19, 0
      %p166 = por %p164, %p165
      %p167 = scmp.ne.s32.totalorder %s153, %s154
      %p168 = scmp.eq.s32.totalorder %s20, 1
      %p169 = por %p167, %p168
      %p171 = scmp.ne.s32.totalorder %s154, %s170
      %p172 = scmp.eq.s32.totalorder %s20, 0
      %p173 = por %p171, %p172
      %p174 = scmp.le.s32.totalorder 1, %s14
      %p175 = scmp.lt.s32.totalorder %s14, 3
      %p176 = pnand %p174, %p175
      %p177 = pneg %p176
      // Predicated region
      $region9: #{tpu_custom_call.1} parent=5 // pred_check
        _
      $region10: #{tpu_custom_call.1} parent=5 // pred_check_branch
        %179 = sbr.rel (%p176) target = $region12
      $region11: #{tpu_custom_call.1} parent=5 // pred_region
        %s180 = ssub.s32 %s14, 1
        // Predicated region
        $region13: #{tpu_custom_call.1} parent=11 // pred_check
          %p181 = pneg %p75
        $region14: #{tpu_custom_call.1} parent=11 // pred_check_branch
          %183 = sbr.rel (%p181) target = $region16
        $region15: #{tpu_custom_call.1} parent=11 // pred_region
          _
        $region16: #{tpu_custom_call.1} parent=11 // pred_fallthru
          _
        // Predicated region
        $region17: #{tpu_custom_call.1} parent=11 // pred_check
          %p184 = pneg %p96
        $region18: #{tpu_custom_call.1} parent=11 // pred_check_branch
          %186 = sbr.rel (%p184) target = $region20
        $region19: #{tpu_custom_call.1} parent=11 // pred_region
          _
        $region20: #{tpu_custom_call.1} parent=11 // pred_fallthru
          _
        // Predicated region
        $region21: #{tpu_custom_call.1} parent=11 // pred_check
          %p187 = pneg %p117
        $region22: #{tpu_custom_call.1} parent=11 // pred_check_branch
          %189 = sbr.rel (%p187) target = $region24
        $region23: #{tpu_custom_call.1} parent=11 // pred_region
          _
        $region24: #{tpu_custom_call.1} parent=11 // pred_fallthru
          _
        // Predicated region
        $region25: #{tpu_custom_call.1} parent=11 // pred_check
          %p190 = pneg %p138
        $region26: #{tpu_custom_call.1} parent=11 // pred_check_branch
          %192 = sbr.rel (%p190) target = $region28
        $region27: #{tpu_custom_call.1} parent=11 // pred_region
          _
        $region28: #{tpu_custom_call.1} parent=11 // pred_fallthru
          _
      $region12: #{tpu_custom_call.1} parent=5 // pred_fallthru
        _
      %p193 = scmp.lt.s32.totalorder %s14, 2
      // Predicated region
      $region29: #{tpu_custom_call.1} parent=5 // pred_check
        %p194 = pneg %p193
      $region30: #{tpu_custom_call.1} parent=5 // pred_check_branch
        %196 = sbr.rel (%p194) target = $region32
      $region31: #{tpu_custom_call.1} parent=5 // pred_region
        // Predicated region
        $region33: #{tpu_custom_call.1} parent=31 // pred_check
          %p197 = pneg %p48
        $region34: #{tpu_custom_call.1} parent=31 // pred_check_branch
          %199 = sbr.rel (%p197) target = $region36
        $region35: #{tpu_custom_call.1} parent=31 // pred_region
          %s200 = smul.u32 2, %s22
          %p201 = scmp.lt.s32.totalorder %s21, 1
          %s202 = scalar_select %p201, %s21, 1
          %p203 = scmp.lt.s32.totalorder %s200, 1
          %s204 = scalar_select %p203, %s200, 1
          %s205 = smul.addr %s202, 2
          %s206 = sadd.s32 %s204, %s205
          %s207 = smul.addr %s206, 4
          %s208 = scalar_lea.vmem %s0, %s207
          %s209 = smul.u32 2, %s22
        $region36: #{tpu_custom_call.1} parent=31 // pred_fallthru
          _
      $region32: #{tpu_custom_call.1} parent=5 // pred_fallthru
        _
      %p210 = scmp.le.s32.totalorder 1, %s14
      %p211 = scmp.lt.s32.totalorder %s14, 3
      %p212 = pnand %p210, %p211
      %p213 = pneg %p212
      // Predicated region
      $region37: #{tpu_custom_call.1} parent=5 // pred_check
        _
      $region38: #{tpu_custom_call.1} parent=5 // pred_check_branch
        %215 = sbr.rel (%p212) target = $region40
      $region39: #{tpu_custom_call.1} parent=5 // pred_region
        %s216 = ssub.s32 %s14, 1
        %s217 = smul.u32 2, %s24
        %p218 = scmp.lt.s32.totalorder %s23, 1
        %s219 = scalar_select %p218, %s23, 1
        %p220 = scmp.lt.s32.totalorder %s217, 1
        %s221 = scalar_select %p220, %s217, 1
        %s222 = smul.addr %s219, 2
        %s223 = sadd.s32 %s221, %s222
        %s224 = smul.addr %s223, 4
        %s225 = scalar_lea.vmem %s0, %s224
        %p226 = pneg %p54
        %p227 = pneg %p51
        %p228 = pneg %p75
        %p229 = pneg %p72
        %p230 = pneg %p96
        %p231 = pneg %p93
        %p232 = pneg %p117
        %p233 = pneg %p114
        %p234 = pneg %p138
        %p235 = pneg %p135
        %p236 = pneg %p166
        %p237 = pneg %p163
        %s238 = sand.u32 %s153, 1
        %s239 = scalar_lea.sflag [#allocation3], %s238
        %s240 = sand.u32 %s153, 1
        %s241 = smul.addr %s240, 8
        %s242 = scalar_lea.vmem [#allocation2], %s241
        %s243 = smul.u32 2, %s24
        %p244 = scmp.lt.s32.totalorder %s23, 1
        %s245 = scalar_select %p244, %s23, 1
        %p246 = scmp.lt.s32.totalorder %s243, 1
        %s247 = scalar_select %p246, %s243, 1
        %s248 = smul.addr %s245, 2
        %s249 = sadd.s32 %s247, %s248
        %s250 = smul.addr %s249, 4
        %s251 = scalar_lea.vmem %s0, %s250
        %s252 = smul.u32 2, %s24
        %s253 = smul.u32 2, %s24
        %v254 = vld [vmem:[%s251] sm:$0xff]
        %v255 = vld [vmem:[%s1] sm:$0xff]
        %v256 = vld [vmem:[%s1 + $0x8] sm:$0xff]
        %v257 = vld [vmem:[%s1 + $0x10] sm:$0xff]
        %v258 = vld [vmem:[%s1 + $0x18] sm:$0xff]
        %v259 = vld [vmem:[%s2] sm:$0xff]
        %v260 = vld [vmem:[%s2 + $0x8] sm:$0xff]
        %v261 = vld [vmem:[%s2 + $0x10] sm:$0xff]
        %v262 = vld [vmem:[%s2 + $0x18] sm:$0xff]
        %264 = vset.pattern.permute.xlu0 0
        %265 = vperm.xlu0 %264, %v259
        %v266 = vpop.permute.xlu0 %265
        %269 = vset.pattern.permute.xlu0 0
        %270 = vperm.xlu0 %269, %v260
        %v271 = vpop.permute.xlu0 %270
        %274 = vset.pattern.permute.xlu0 0
        %275 = vperm.xlu0 %274, %v261
        %v276 = vpop.permute.xlu0 %275
        %279 = vset.pattern.permute.xlu0 0
        %280 = vperm.xlu0 %279, %v262
        %v281 = vpop.permute.xlu0 %280
        %v284 = vcombine.high %v254, %v254
        %vm285 = vcmask 31744
        %v287 = vsel %vm285, %v255, 0
        %v290 = vsel %vm285, %v256, 0
        %v293 = vsel %vm285, %v257, 0
        %v296 = vsel %vm285, %v258, 0
        %vm298 = vcmask 1043456
        %v299 = vsel %vm298, %v254, 0
        %v301 = vsel %vm298, %v284, 0
        %v303 = vand.u32 %v301, 4294901760
        %304 = vmatprep.subr.mxu0 %v303
        %v305 = vand.u32 %v299, 4294901760
        %306 = vmatpush1.msra.mxu0 %v305
        %307 = vmatprep.subr.mxu0 0.0
        %308 = vmatpush1.msra.mxu0 0.0
        %309 = vmatprep.subr.mxu0 0.0
        %310 = vmatpush1.msra.mxu0 0.0
        %311 = vmatprep.subr.mxu0 0.0
        %312 = vmatpush1.msra.mxu0 0.0
        %313 = vmatprep.subr.mxu0 0.0
        %314 = vmatpush1.msra.mxu0 0.0
        %315 = vmatprep.subr.mxu0 0.0
        %316 = vmatpush1.msra.mxu0 0.0
        %317 = vmatprep.subr.mxu0 0.0
        %318 = vmatpush1.msra.mxu0 0.0
        %319 = vmatprep.subr.mxu0 0.0
        %320 = vmatpush1.msra.mxu0 0.0
        %321 = vmatprep.subr.mxu0 0.0
        %322 = vmatpush1.msra.mxu0 0.0
        %323 = vmatprep.subr.mxu0 0.0
        %324 = vmatpush1.msra.mxu0 0.0
        %325 = vmatprep.subr.mxu0 0.0
        %326 = vmatpush1.msra.mxu0 0.0
        %327 = vmatprep.subr.mxu0 0.0
        %328 = vmatpush1.msra.mxu0 0.0
        %329 = vmatprep.subr.mxu0 0.0
        %330 = vmatpush1.msra.mxu0 0.0
        %331 = vmatprep.subr.mxu0 0.0
        %332 = vmatpush1.msra.mxu0 0.0
        %333 = vmatprep.subr.mxu0 0.0
        %334 = vmatpush1.msra.mxu0 0.0
        %335 = vmatprep.subr.mxu0 0.0
        %336 = vmatpush1.msra.mxu0 0.0
        %337 = vmatprep.subr.mxu0 0.0
        %338 = vmatpush1.msra.mxu0 0.0
        %339 = vmatprep.subr.mxu0 0.0
        %340 = vmatpush1.msra.mxu0 0.0
        %341 = vmatprep.subr.mxu0 0.0
        %342 = vmatpush1.msra.mxu0 0.0
        %343 = vmatprep.subr.mxu0 0.0
        %344 = vmatpush1.msra.mxu0 0.0
        %345 = vmatprep.subr.mxu0 0.0
        %346 = vmatpush1.msra.mxu0 0.0
        %347 = vmatprep.subr.mxu0 0.0
        %348 = vmatpush1.msra.mxu0 0.0
        %349 = vmatprep.subr.mxu0 0.0
        %350 = vmatpush1.msra.mxu0 0.0
        %351 = vmatprep.subr.mxu0 0.0
        %352 = vmatpush1.msra.mxu0 0.0
        %353 = vmatprep.subr.mxu0 0.0
        %354 = vmatpush1.msra.mxu0 0.0
        %355 = vmatprep.subr.mxu0 0.0
        %356 = vmatpush1.msra.mxu0 0.0
        %357 = vmatprep.subr.mxu0 0.0
        %358 = vmatpush1.msra.mxu0 0.0
        %359 = vmatprep.subr.mxu0 0.0
        %360 = vmatpush1.msra.mxu0 0.0
        %361 = vmatprep.subr.mxu0 0.0
        %362 = vmatpush1.msra.mxu0 0.0
        %363 = vmatprep.subr.mxu0 0.0
        %364 = vmatpush1.msra.mxu0 0.0
        %365 = vmatprep.subr.mxu0 0.0
        %366 = vmatpush1.msra.mxu0 0.0
        %367 = vmatprep.subr.mxu0 0.0
        %368 = vmatpush1.msra.mxu0 0.0
        %369 = vmatprep.mubr.f32.mxu0 0.0
        %v370 = vand.u32 %v287, 4294901760
        %v371 = vsub.f32 %v287, %v370
        %v372 = vand.u32 %v371, 4294901760
        %v373 = vsub.f32 %v371, %v372
        %v374 = vand.u32 %v373, 4294901760
        %375 = vmatmul.mubr.f32.gmra.mrb[0].mxu0 %v374
        %v376 = vpop.f32.mrb[0].mxu0
        %v377 = vadd.f32 %v266, %v376
        %v378 = vpop.f32.mrb[0].mxu0
        %v379 = vadd.f32 %v266, %v378
        %380 = vmatprep.mubr.f32.mxu0 0.0
        %v381 = vand.u32 %v290, 4294901760
        %v382 = vsub.f32 %v290, %v381
        %v383 = vand.u32 %v382, 4294901760
        %v384 = vsub.f32 %v382, %v383
        %v385 = vand.u32 %v384, 4294901760
        %386 = vmatmul.mubr.f32.gmra.mrb[0].mxu0 %v385
        %v387 = vpop.f32.mrb[0].mxu0
        %v388 = vadd.f32 %v271, %v387
        %v389 = vpop.f32.mrb[0].mxu0
        %v390 = vadd.f32 %v271, %v389
        %391 = vmatprep.mubr.f32.mxu0 0.0
        %v392 = vand.u32 %v293, 4294901760
        %v393 = vsub.f32 %v293, %v392
        %v394 = vand.u32 %v393, 4294901760
        %v395 = vsub.f32 %v393, %v394
        %v396 = vand.u32 %v395, 4294901760
        %397 = vmatmul.mubr.f32.gmra.mrb[0].mxu0 %v396
        %v398 = vpop.f32.mrb[0].mxu0
        %v399 = vadd.f32 %v276, %v398
        %v400 = vpop.f32.mrb[0].mxu0
        %v401 = vadd.f32 %v276, %v400
        %402 = vmatprep.mubr.f32.mxu0 0.0
        %v403 = vand.u32 %v296, 4294901760
        %v404 = vsub.f32 %v296, %v403
        %v405 = vand.u32 %v404, 4294901760
        %v406 = vsub.f32 %v404, %v405
        %v407 = vand.u32 %v406, 4294901760
        %408 = vmatmul.mubr.f32.gmra.mrb[0].mxu0 %v407
        %v409 = vpop.f32.mrb[0].mxu0
        %v410 = vadd.f32 %v281, %v409
        %v411 = vpop.f32.mrb[0].mxu0
        %v412 = vadd.f32 %v281, %v411
        %413 = vdwg.mxu0
        %v414 = vand.u32 %v301, 4294901760
        %v415 = vsub.f32 %v301, %v414
        %v416 = vand.u32 %v415, 4294901760
        %v417 = vsub.f32 %v415, %v416
        %v418 = vand.u32 %v417, 4294901760
        %419 = vmatprep.subr.mxu0 %v418
        %v420 = vand.u32 %v299, 4294901760
        %v421 = vsub.f32 %v299, %v420
        %v422 = vand.u32 %v421, 4294901760
        %v423 = vsub.f32 %v421, %v422
        %v424 = vand.u32 %v423, 4294901760
        %425 = vmatpush1.msra.mxu0 %v424
        %426 = vmatprep.subr.mxu0 0.0
        %427 = vmatpush1.msra.mxu0 0.0
        %428 = vmatprep.subr.mxu0 0.0
        %429 = vmatpush1.msra.mxu0 0.0
        %430 = vmatprep.subr.mxu0 0.0
        %431 = vmatpush1.msra.mxu0 0.0
        %432 = vmatprep.subr.mxu0 0.0
        %433 = vmatpush1.msra.mxu0 0.0
        %434 = vmatprep.subr.mxu0 0.0
        %435 = vmatpush1.msra.mxu0 0.0
        %436 = vmatprep.subr.mxu0 0.0
        %437 = vmatpush1.msra.mxu0 0.0
        %438 = vmatprep.subr.mxu0 0.0
        %439 = vmatpush1.msra.mxu0 0.0
        %440 = vmatprep.subr.mxu0 0.0
        %441 = vmatpush1.msra.mxu0 0.0
        %442 = vmatprep.subr.mxu0 0.0
        %443 = vmatpush1.msra.mxu0 0.0
        %444 = vmatprep.subr.mxu0 0.0
        %445 = vmatpush1.msra.mxu0 0.0
        %446 = vmatprep.subr.mxu0 0.0
        %447 = vmatpush1.msra.mxu0 0.0
        %448 = vmatprep.subr.mxu0 0.0
        %449 = vmatpush1.msra.mxu0 0.0
        %450 = vmatprep.subr.mxu0 0.0
        %451 = vmatpush1.msra.mxu0 0.0
        %452 = vmatprep.subr.mxu0 0.0
        %453 = vmatpush1.msra.mxu0 0.0
        %454 = vmatprep.subr.mxu0 0.0
        %455 = vmatpush1.msra.mxu0 0.0
        %456 = vmatprep.subr.mxu0 0.0
        %457 = vmatpush1.msra.mxu0 0.0
        %458 = vmatprep.subr.mxu0 0.0
        %459 = vmatpush1.msra.mxu0 0.0
        %460 = vmatprep.subr.mxu0 0.0
        %461 = vmatpush1.msra.mxu0 0.0
        %462 = vmatprep.subr.mxu0 0.0
        %463 = vmatpush1.msra.mxu0 0.0
        %464 = vmatprep.subr.mxu0 0.0
        %465 = vmatpush1.msra.mxu0 0.0
        %466 = vmatprep.subr.mxu0 0.0
        %467 = vmatpush1.msra.mxu0 0.0
        %468 = vmatprep.subr.mxu0 0.0
        %469 = vmatpush1.msra.mxu0 0.0
        %470 = vmatprep.subr.mxu0 0.0
        %471 = vmatpush1.msra.mxu0 0.0
        %472 = vmatprep.subr.mxu0 0.0
        %473 = vmatpush1.msra.mxu0 0.0
        %474 = vmatprep.subr.mxu0 0.0
        %475 = vmatpush1.msra.mxu0 0.0
        %476 = vmatprep.subr.mxu0 0.0
        %477 = vmatpush1.msra.mxu0 0.0
        %478 = vmatprep.subr.mxu0 0.0
        %479 = vmatpush1.msra.mxu0 0.0
        %480 = vmatprep.subr.mxu0 0.0
        %481 = vmatpush1.msra.mxu0 0.0
        %482 = vmatprep.subr.mxu0 0.0
        %483 = vmatpush1.msra.mxu0 0.0
        %484 = vmatprep.subr.mxu0 0.0
        %485 = vmatpush1.msra.mxu0 0.0
        %486 = vmatprep.subr.mxu0 0.0
        %487 = vmatpush1.msra.mxu0 0.0
        %488 = vmatprep.mubr.f32.mxu0 0.0
        %v489 = vand.u32 %v287, 4294901760
        %490 = vmatmul.mubr.f32.gmra.mrb[0].mxu0 %v489
        %v491 = vpop.f32.mrb[0].mxu0
        %v492 = vadd.f32 %v377, %v491
        %v493 = vpop.f32.mrb[0].mxu0
        %v494 = vadd.f32 %v379, %v493
        %495 = vmatprep.mubr.f32.mxu0 0.0
        %v496 = vand.u32 %v290, 4294901760
        %497 = vmatmul.mubr.f32.gmra.mrb[0].mxu0 %v496
        %v498 = vpop.f32.mrb[0].mxu0
        %v499 = vadd.f32 %v388, %v498
        %v500 = vpop.f32.mrb[0].mxu0
        %v501 = vadd.f32 %v390, %v500
        %502 = vmatprep.mubr.f32.mxu0 0.0
        %v503 = vand.u32 %v293, 4294901760
        %504 = vmatmul.mubr.f32.gmra.mrb[0].mxu0 %v503
        %v505 = vpop.f32.mrb[0].mxu0
        %v506 = vadd.f32 %v399, %v505
        %v507 = vpop.f32.mrb[0].mxu0
        %v508 = vadd.f32 %v401, %v507
        %509 = vmatprep.mubr.f32.mxu0 0.0
        %v510 = vand.u32 %v296, 4294901760
        %511 = vmatmul.mubr.f32.gmra.mrb[0].mxu0 %v510
        %v512 = vpop.f32.mrb[0].mxu0
        %v513 = vadd.f32 %v410, %v512
        %v514 = vpop.f32.mrb[0].mxu0
        %v515 = vadd.f32 %v412, %v514
        %516 = vdwg.mxu0
        %v517 = vand.u32 %v301, 4294901760
        %v518 = vsub.f32 %v301, %v517
        %519 = vmatprep.subr.mxu0 %v518
        %v520 = vand.u32 %v299, 4294901760
        %v521 = vsub.f32 %v299, %v520
        %522 = vmatpush1.msra.mxu0 %v521
        %523 = vmatprep.subr.mxu0 0.0
        %524 = vmatpush1.msra.mxu0 0.0
        %525 = vmatprep.subr.mxu0 0.0
        %526 = vmatpush1.msra.mxu0 0.0
        %527 = vmatprep.subr.mxu0 0.0
        %528 = vmatpush1.msra.mxu0 0.0
        %529 = vmatprep.subr.mxu0 0.0
        %530 = vmatpush1.msra.mxu0 0.0
        %531 = vmatprep.subr.mxu0 0.0
        %532 = vmatpush1.msra.mxu0 0.0
        %533 = vmatprep.subr.mxu0 0.0
        %534 = vmatpush1.msra.mxu0 0.0
        %535 = vmatprep.subr.mxu0 0.0
        %536 = vmatpush1.msra.mxu0 0.0
        %537 = vmatprep.subr.mxu0 0.0
        %538 = vmatpush1.msra.mxu0 0.0
        %539 = vmatprep.subr.mxu0 0.0
        %540 = vmatpush1.msra.mxu0 0.0
        %541 = vmatprep.subr.mxu0 0.0
        %542 = vmatpush1.msra.mxu0 0.0
        %543 = vmatprep.subr.mxu0 0.0
        %544 = vmatpush1.msra.mxu0 0.0
        %545 = vmatprep.subr.mxu0 0.0
        %546 = vmatpush1.msra.mxu0 0.0
        %547 = vmatprep.subr.mxu0 0.0
        %548 = vmatpush1.msra.mxu0 0.0
        %549 = vmatprep.subr.mxu0 0.0
        %550 = vmatpush1.msra.mxu0 0.0
        %551 = vmatprep.subr.mxu0 0.0
        %552 = vmatpush1.msra.mxu0 0.0
        %553 = vmatprep.subr.mxu0 0.0
        %554 = vmatpush1.msra.mxu0 0.0
        %555 = vmatprep.subr.mxu0 0.0
        %556 = vmatpush1.msra.mxu0 0.0
        %557 = vmatprep.subr.mxu0 0.0
        %558 = vmatpush1.msra.mxu0 0.0
        %559 = vmatprep.subr.mxu0 0.0
        %560 = vmatpush1.msra.mxu0 0.0
        %561 = vmatprep.subr.mxu0 0.0
        %562 = vmatpush1.msra.mxu0 0.0
        %563 = vmatprep.subr.mxu0 0.0
        %564 = vmatpush1.msra.mxu0 0.0
        %565 = vmatprep.subr.mxu0 0.0
        %566 = vmatpush1.msra.mxu0 0.0
        %567 = vmatprep.subr.mxu0 0.0
        %568 = vmatpush1.msra.mxu0 0.0
        %569 = vmatprep.subr.mxu0 0.0
        %570 = vmatpush1.msra.mxu0 0.0
        %571 = vmatprep.subr.mxu0 0.0
        %572 = vmatpush1.msra.mxu0 0.0
        %573 = vmatprep.subr.mxu0 0.0
        %574 = vmatpush1.msra.mxu0 0.0
        %575 = vmatprep.subr.mxu0 0.0
        %576 = vmatpush1.msra.mxu0 0.0
        %577 = vmatprep.subr.mxu0 0.0
        %578 = vmatpush1.msra.mxu0 0.0
        %579 = vmatprep.subr.mxu0 0.0
        %580 = vmatpush1.msra.mxu0 0.0
        %581 = vmatprep.subr.mxu0 0.0
        %582 = vmatpush1.msra.mxu0 0.0
        %583 = vmatprep.subr.mxu0 0.0
        %584 = vmatpush1.msra.mxu0 0.0
        %585 = vmatprep.mubr.f32.mxu0 0.0
        %v586 = vand.u32 %v287, 4294901760
        %v587 = vsub.f32 %v287, %v586
        %588 = vmatmul.mubr.f32.gmra.mrb[0].mxu0 %v587
        %v589 = vpop.f32.mrb[0].mxu0
        %v590 = vadd.f32 %v492, %v589
        %v591 = vpop.f32.mrb[0].mxu0
        %v592 = vadd.f32 %v494, %v591
        %593 = vmatprep.mubr.f32.mxu0 0.0
        %v594 = vand.u32 %v290, 4294901760
        %v595 = vsub.f32 %v290, %v594
        %596 = vmatmul.mubr.f32.gmra.mrb[0].mxu0 %v595
        %v597 = vpop.f32.mrb[0].mxu0
        %v598 = vadd.f32 %v499, %v597
        %v599 = vpop.f32.mrb[0].mxu0
        %v600 = vadd.f32 %v501, %v599
        %601 = vmatprep.mubr.f32.mxu0 0.0
        %v602 = vand.u32 %v293, 4294901760
        %v603 = vsub.f32 %v293, %v602
        %604 = vmatmul.mubr.f32.gmra.mrb[0].mxu0 %v603
        %v605 = vpop.f32.mrb[0].mxu0
        %v606 = vadd.f32 %v506, %v605
        %v607 = vpop.f32.mrb[0].mxu0
        %v608 = vadd.f32 %v508, %v607
        %609 = vmatprep.mubr.f32.mxu0 0.0
        %v610 = vand.u32 %v296, 4294901760
        %v611 = vsub.f32 %v296, %v610
        %612 = vmatmul.mubr.f32.gmra.mrb[0].mxu0 %v611
        %v613 = vpop.f32.mrb[0].mxu0
        %v614 = vadd.f32 %v513, %v613
        %v615 = vpop.f32.mrb[0].mxu0
        %v616 = vadd.f32 %v515, %v615
        %617 = vdwg.mxu0
        %v618 = vand.u32 %v301, 4294901760
        %619 = vmatprep.subr.mxu0 %v618
        %v620 = vand.u32 %v299, 4294901760
        %621 = vmatpush1.msra.mxu0 %v620
        %622 = vmatprep.subr.mxu0 0.0
        %623 = vmatpush1.msra.mxu0 0.0
        %624 = vmatprep.subr.mxu0 0.0
        %625 = vmatpush1.msra.mxu0 0.0
        %626 = vmatprep.subr.mxu0 0.0
        %627 = vmatpush1.msra.mxu0 0.0
        %628 = vmatprep.subr.mxu0 0.0
        %629 = vmatpush1.msra.mxu0 0.0
        %630 = vmatprep.subr.mxu0 0.0
        %631 = vmatpush1.msra.mxu0 0.0
        %632 = vmatprep.subr.mxu0 0.0
        %633 = vmatpush1.msra.mxu0 0.0
        %634 = vmatprep.subr.mxu0 0.0
        %635 = vmatpush1.msra.mxu0 0.0
        %636 = vmatprep.subr.mxu0 0.0
        %637 = vmatpush1.msra.mxu0 0.0
        %638 = vmatprep.subr.mxu0 0.0
        %639 = vmatpush1.msra.mxu0 0.0
        %640 = vmatprep.subr.mxu0 0.0
        %641 = vmatpush1.msra.mxu0 0.0
        %642 = vmatprep.subr.mxu0 0.0
        %643 = vmatpush1.msra.mxu0 0.0
        %644 = vmatprep.subr.mxu0 0.0
        %645 = vmatpush1.msra.mxu0 0.0
        %646 = vmatprep.subr.mxu0 0.0
        %647 = vmatpush1.msra.mxu0 0.0
        %648 = vmatprep.subr.mxu0 0.0
        %649 = vmatpush1.msra.mxu0 0.0
        %650 = vmatprep.subr.mxu0 0.0
        %651 = vmatpush1.msra.mxu0 0.0
        %652 = vmatprep.subr.mxu0 0.0
        %653 = vmatpush1.msra.mxu0 0.0
        %654 = vmatprep.subr.mxu0 0.0
        %655 = vmatpush1.msra.mxu0 0.0
        %656 = vmatprep.subr.mxu0 0.0
        %657 = vmatpush1.msra.mxu0 0.0
        %658 = vmatprep.subr.mxu0 0.0
        %659 = vmatpush1.msra.mxu0 0.0
        %660 = vmatprep.subr.mxu0 0.0
        %661 = vmatpush1.msra.mxu0 0.0
        %662 = vmatprep.subr.mxu0 0.0
        %663 = vmatpush1.msra.mxu0 0.0
        %664 = vmatprep.subr.mxu0 0.0
        %665 = vmatpush1.msra.mxu0 0.0
        %666 = vmatprep.subr.mxu0 0.0
        %667 = vmatpush1.msra.mxu0 0.0
        %668 = vmatprep.subr.mxu0 0.0
        %669 = vmatpush1.msra.mxu0 0.0
        %670 = vmatprep.subr.mxu0 0.0
        %671 = vmatpush1.msra.mxu0 0.0
        %672 = vmatprep.subr.mxu0 0.0
        %673 = vmatpush1.msra.mxu0 0.0
        %674 = vmatprep.subr.mxu0 0.0
        %675 = vmatpush1.msra.mxu0 0.0
        %676 = vmatprep.subr.mxu0 0.0
        %677 = vmatpush1.msra.mxu0 0.0
        %678 = vmatprep.subr.mxu0 0.0
        %679 = vmatpush1.msra.mxu0 0.0
        %680 = vmatprep.subr.mxu0 0.0
        %681 = vmatpush1.msra.mxu0 0.0
        %682 = vmatprep.subr.mxu0 0.0
        %683 = vmatpush1.msra.mxu0 0.0
        %684 = vmatprep.mubr.f32.mxu0 0.0
        %v685 = vand.u32 %v287, 4294901760
        %v686 = vsub.f32 %v287, %v685
        %v687 = vand.u32 %v686, 4294901760
        %688 = vmatmul.mubr.f32.gmra.mrb[0].mxu0 %v687
        %v689 = vpop.f32.mrb[0].mxu0
        %v690 = vadd.f32 %v590, %v689
        %v691 = vpop.f32.mrb[0].mxu0
        %v692 = vadd.f32 %v592, %v691
        %693 = vmatprep.mubr.f32.mxu0 0.0
        %v694 = vand.u32 %v290, 4294901760
        %v695 = vsub.f32 %v290, %v694
        %v696 = vand.u32 %v695, 4294901760
        %697 = vmatmul.mubr.f32.gmra.mrb[0].mxu0 %v696
        %v698 = vpop.f32.mrb[0].mxu0
        %v699 = vadd.f32 %v598, %v698
        %v700 = vpop.f32.mrb[0].mxu0
        %v701 = vadd.f32 %v600, %v700
        %702 = vmatprep.mubr.f32.mxu0 0.0
        %v703 = vand.u32 %v293, 4294901760
        %v704 = vsub.f32 %v293, %v703
        %v705 = vand.u32 %v704, 4294901760
        %706 = vmatmul.mubr.f32.gmra.mrb[0].mxu0 %v705
        %v707 = vpop.f32.mrb[0].mxu0
        %v708 = vadd.f32 %v606, %v707
        %v709 = vpop.f32.mrb[0].mxu0
        %v710 = vadd.f32 %v608, %v709
        %711 = vmatprep.mubr.f32.mxu0 0.0
        %v712 = vand.u32 %v296, 4294901760
        %v713 = vsub.f32 %v296, %v712
        %v714 = vand.u32 %v713, 4294901760
        %715 = vmatmul.mubr.f32.gmra.mrb[0].mxu0 %v714
        %v716 = vpop.f32.mrb[0].mxu0
        %v717 = vadd.f32 %v614, %v716
        %v718 = vpop.f32.mrb[0].mxu0
        %v719 = vadd.f32 %v616, %v718
        %720 = vdwg.mxu0
        %v721 = vand.u32 %v301, 4294901760
        %v722 = vsub.f32 %v301, %v721
        %v723 = vand.u32 %v722, 4294901760
        %724 = vmatprep.subr.mxu0 %v723
        %v725 = vand.u32 %v299, 4294901760
        %v726 = vsub.f32 %v299, %v725
        %v727 = vand.u32 %v726, 4294901760
        %728 = vmatpush1.msra.mxu0 %v727
        %729 = vmatprep.subr.mxu0 0.0
        %730 = vmatpush1.msra.mxu0 0.0
        %731 = vmatprep.subr.mxu0 0.0
        %732 = vmatpush1.msra.mxu0 0.0
        %733 = vmatprep.subr.mxu0 0.0
        %734 = vmatpush1.msra.mxu0 0.0
        %735 = vmatprep.subr.mxu0 0.0
        %736 = vmatpush1.msra.mxu0 0.0
        %737 = vmatprep.subr.mxu0 0.0
        %738 = vmatpush1.msra.mxu0 0.0
        %739 = vmatprep.subr.mxu0 0.0
        %740 = vmatpush1.msra.mxu0 0.0
        %741 = vmatprep.subr.mxu0 0.0
        %742 = vmatpush1.msra.mxu0 0.0
        %743 = vmatprep.subr.mxu0 0.0
        %744 = vmatpush1.msra.mxu0 0.0
        %745 = vmatprep.subr.mxu0 0.0
        %746 = vmatpush1.msra.mxu0 0.0
        %747 = vmatprep.subr.mxu0 0.0
        %748 = vmatpush1.msra.mxu0 0.0
        %749 = vmatprep.subr.mxu0 0.0
        %750 = vmatpush1.msra.mxu0 0.0
        %751 = vmatprep.subr.mxu0 0.0
        %752 = vmatpush1.msra.mxu0 0.0
        %753 = vmatprep.subr.mxu0 0.0
        %754 = vmatpush1.msra.mxu0 0.0
        %755 = vmatprep.subr.mxu0 0.0
        %756 = vmatpush1.msra.mxu0 0.0
        %757 = vmatprep.subr.mxu0 0.0
        %758 = vmatpush1.msra.mxu0 0.0
        %759 = vmatprep.subr.mxu0 0.0
        %760 = vmatpush1.msra.mxu0 0.0
        %761 = vmatprep.subr.mxu0 0.0
        %762 = vmatpush1.msra.mxu0 0.0
        %763 = vmatprep.subr.mxu0 0.0
        %764 = vmatpush1.msra.mxu0 0.0
        %765 = vmatprep.subr.mxu0 0.0
        %766 = vmatpush1.msra.mxu0 0.0
        %767 = vmatprep.subr.mxu0 0.0
        %768 = vmatpush1.msra.mxu0 0.0
        %769 = vmatprep.subr.mxu0 0.0
        %770 = vmatpush1.msra.mxu0 0.0
        %771 = vmatprep.subr.mxu0 0.0
        %772 = vmatpush1.msra.mxu0 0.0
        %773 = vmatprep.subr.mxu0 0.0
        %774 = vmatpush1.msra.mxu0 0.0
        %775 = vmatprep.subr.mxu0 0.0
        %776 = vmatpush1.msra.mxu0 0.0
        %777 = vmatprep.subr.mxu0 0.0
        %778 = vmatpush1.msra.mxu0 0.0
        %779 = vmatprep.subr.mxu0 0.0
        %780 = vmatpush1.msra.mxu0 0.0
        %781 = vmatprep.subr.mxu0 0.0
        %782 = vmatpush1.msra.mxu0 0.0
        %783 = vmatprep.subr.mxu0 0.0
        %784 = vmatpush1.msra.mxu0 0.0
        %785 = vmatprep.subr.mxu0 0.0
        %786 = vmatpush1.msra.mxu0 0.0
        %787 = vmatprep.subr.mxu0 0.0
        %788 = vmatpush1.msra.mxu0 0.0
        %789 = vmatprep.subr.mxu0 0.0
        %790 = vmatpush1.msra.mxu0 0.0
        %791 = vmatprep.mubr.f32.mxu0 0.0
        %v792 = vand.u32 %v287, 4294901760
        %793 = vmatmul.mubr.f32.gmra.mrb[0].mxu0 %v792
        %v794 = vpop.f32.mrb[0].mxu0
        %v795 = vadd.f32 %v690, %v794
        %v796 = vpop.f32.mrb[0].mxu0
        %v797 = vadd.f32 %v692, %v796
        %798 = vmatprep.mubr.f32.mxu0 0.0
        %v799 = vand.u32 %v290, 4294901760
        %800 = vmatmul.mubr.f32.gmra.mrb[0].mxu0 %v799
        %v801 = vpop.f32.mrb[0].mxu0
        %v802 = vadd.f32 %v699, %v801
        %v803 = vpop.f32.mrb[0].mxu0
        %v804 = vadd.f32 %v701, %v803
        %805 = vmatprep.mubr.f32.mxu0 0.0
        %v806 = vand.u32 %v293, 4294901760
        %807 = vmatmul.mubr.f32.gmra.mrb[0].mxu0 %v806
        %v808 = vpop.f32.mrb[0].mxu0
        %v809 = vadd.f32 %v708, %v808
        %v810 = vpop.f32.mrb[0].mxu0
        %v811 = vadd.f32 %v710, %v810
        %812 = vmatprep.mubr.f32.mxu0 0.0
        %v813 = vand.u32 %v296, 4294901760
        %814 = vmatmul.mubr.f32.gmra.mrb[0].mxu0 %v813
        %v815 = vpop.f32.mrb[0].mxu0
        %v816 = vadd.f32 %v717, %v815
        %v817 = vpop.f32.mrb[0].mxu0
        %v818 = vadd.f32 %v719, %v817
        %819 = vdwg.mxu0
        %v820 = vand.u32 %v301, 4294901760
        %821 = vmatprep.subr.mxu0 %v820
        %v822 = vand.u32 %v299, 4294901760
        %823 = vmatpush1.msra.mxu0 %v822
        %824 = vmatprep.subr.mxu0 0.0
        %825 = vmatpush1.msra.mxu0 0.0
        %826 = vmatprep.subr.mxu0 0.0
        %827 = vmatpush1.msra.mxu0 0.0
        %828 = vmatprep.subr.mxu0 0.0
        %829 = vmatpush1.msra.mxu0 0.0
        %830 = vmatprep.subr.mxu0 0.0
        %831 = vmatpush1.msra.mxu0 0.0
        %832 = vmatprep.subr.mxu0 0.0
        %833 = vmatpush1.msra.mxu0 0.0
        %834 = vmatprep.subr.mxu0 0.0
        %835 = vmatpush1.msra.mxu0 0.0
        %836 = vmatprep.subr.mxu0 0.0
        %837 = vmatpush1.msra.mxu0 0.0
        %838 = vmatprep.subr.mxu0 0.0
        %839 = vmatpush1.msra.mxu0 0.0
        %840 = vmatprep.subr.mxu0 0.0
        %841 = vmatpush1.msra.mxu0 0.0
        %842 = vmatprep.subr.mxu0 0.0
        %843 = vmatpush1.msra.mxu0 0.0
        %844 = vmatprep.subr.mxu0 0.0
        %845 = vmatpush1.msra.mxu0 0.0
        %846 = vmatprep.subr.mxu0 0.0
        %847 = vmatpush1.msra.mxu0 0.0
        %848 = vmatprep.subr.mxu0 0.0
        %849 = vmatpush1.msra.mxu0 0.0
        %850 = vmatprep.subr.mxu0 0.0
        %851 = vmatpush1.msra.mxu0 0.0
        %852 = vmatprep.subr.mxu0 0.0
        %853 = vmatpush1.msra.mxu0 0.0
        %854 = vmatprep.subr.mxu0 0.0
        %855 = vmatpush1.msra.mxu0 0.0
        %856 = vmatprep.subr.mxu0 0.0
        %857 = vmatpush1.msra.mxu0 0.0
        %858 = vmatprep.subr.mxu0 0.0
        %859 = vmatpush1.msra.mxu0 0.0
        %860 = vmatprep.subr.mxu0 0.0
        %861 = vmatpush1.msra.mxu0 0.0
        %862 = vmatprep.subr.mxu0 0.0
        %863 = vmatpush1.msra.mxu0 0.0
        %864 = vmatprep.subr.mxu0 0.0
        %865 = vmatpush1.msra.mxu0 0.0
        %866 = vmatprep.subr.mxu0 0.0
        %867 = vmatpush1.msra.mxu0 0.0
        %868 = vmatprep.subr.mxu0 0.0
        %869 = vmatpush1.msra.mxu0 0.0
        %870 = vmatprep.subr.mxu0 0.0
        %871 = vmatpush1.msra.mxu0 0.0
        %872 = vmatprep.subr.mxu0 0.0
        %873 = vmatpush1.msra.mxu0 0.0
        %874 = vmatprep.subr.mxu0 0.0
        %875 = vmatpush1.msra.mxu0 0.0
        %876 = vmatprep.subr.mxu0 0.0
        %877 = vmatpush1.msra.mxu0 0.0
        %878 = vmatprep.subr.mxu0 0.0
        %879 = vmatpush1.msra.mxu0 0.0
        %880 = vmatprep.subr.mxu0 0.0
        %881 = vmatpush1.msra.mxu0 0.0
        %882 = vmatprep.subr.mxu0 0.0
        %883 = vmatpush1.msra.mxu0 0.0
        %884 = vmatprep.subr.mxu0 0.0
        %885 = vmatpush1.msra.mxu0 0.0
        %886 = vmatprep.mubr.f32.mxu0 0.0
        %v887 = vand.u32 %v287, 4294901760
        %888 = vmatmul.mubr.f32.gmra.mrb[0].mxu0 %v887
        %v889 = vpop.f32.mrb[0].mxu0
        %v890 = vadd.f32 %v795, %v889
        %v891 = vpop.f32.mrb[0].mxu0
        %v892 = vadd.f32 %v797, %v891
        %893 = vmatprep.mubr.f32.mxu0 0.0
        %v894 = vand.u32 %v290, 4294901760
        %895 = vmatmul.mubr.f32.gmra.mrb[0].mxu0 %v894
        %v896 = vpop.f32.mrb[0].mxu0
        %v897 = vadd.f32 %v802, %v896
        %v898 = vpop.f32.mrb[0].mxu0
        %v899 = vadd.f32 %v804, %v898
        %900 = vmatprep.mubr.f32.mxu0 0.0
        %v901 = vand.u32 %v293, 4294901760
        %902 = vmatmul.mubr.f32.gmra.mrb[0].mxu0 %v901
        %v903 = vpop.f32.mrb[0].mxu0
        %v904 = vadd.f32 %v809, %v903
        %v905 = vpop.f32.mrb[0].mxu0
        %v906 = vadd.f32 %v811, %v905
        %907 = vmatprep.mubr.f32.mxu0 0.0
        %v908 = vand.u32 %v296, 4294901760
        %909 = vmatmul.mubr.f32.gmra.mrb[0].mxu0 %v908
        %v910 = vpop.f32.mrb[0].mxu0
        %v911 = vadd.f32 %v816, %v910
        %v912 = vpop.f32.mrb[0].mxu0
        %v913 = vadd.f32 %v818, %v912
        %914 = vdwg.mxu0
        %v915 = vmax.f32 %v890, 0.0
        %v916 = vmax.f32 %v892, 0.0
        %v917 = vmax.f32 %v897, 0.0
        %v918 = vmax.f32 %v899, 0.0
        %v919 = vmax.f32 %v904, 0.0
        %v920 = vmax.f32 %v906, 0.0
        %v921 = vmax.f32 %v911, 0.0
        %v922 = vmax.f32 %v913, 0.0
        %v923 = vld [vmem:[%s3] sm:$0xf]
        %v924 = vld [vmem:[%s4] sm:$0xf]
        %926 = vset.pattern.permute.xlu0 0
        %927 = vperm.xlu0 %926, %v924
        %v928 = vpop.permute.xlu0 %927
        %vm930 = vcmask 261120
        %v932 = vsel %vm930, %v923, 0
        %v934 = vand.u32 %v916, 4294901760
        %935 = vmatprep.subr.mxu0 %v934
        %v936 = vand.u32 %v915, 4294901760
        %937 = vmatpush1.msra.mxu0 %v936
        %v938 = vand.u32 %v918, 4294901760
        %939 = vmatprep.subr.mxu0 %v938
        %v940 = vand.u32 %v917, 4294901760
        %941 = vmatpush1.msra.mxu0 %v940
        %v942 = vand.u32 %v920, 4294901760
        %943 = vmatprep.subr.mxu0 %v942
        %v944 = vand.u32 %v919, 4294901760
        %945 = vmatpush1.msra.mxu0 %v944
        %v946 = vand.u32 %v922, 4294901760
        %947 = vmatprep.subr.mxu0 %v946
        %v948 = vand.u32 %v921, 4294901760
        %949 = vmatpush1.msra.mxu0 %v948
        %950 = vmatprep.subr.mxu0 0.0
        %951 = vmatpush1.msra.mxu0 0.0
        %952 = vmatprep.subr.mxu0 0.0
        %953 = vmatpush1.msra.mxu0 0.0
        %954 = vmatprep.subr.mxu0 0.0
        %955 = vmatpush1.msra.mxu0 0.0
        %956 = vmatprep.subr.mxu0 0.0
        %957 = vmatpush1.msra.mxu0 0.0
        %958 = vmatprep.subr.mxu0 0.0
        %959 = vmatpush1.msra.mxu0 0.0
        %960 = vmatprep.subr.mxu0 0.0
        %961 = vmatpush1.msra.mxu0 0.0
        %962 = vmatprep.subr.mxu0 0.0
        %963 = vmatpush1.msra.mxu0 0.0
        %964 = vmatprep.subr.mxu0 0.0
        %965 = vmatpush1.msra.mxu0 0.0
        %966 = vmatprep.subr.mxu0 0.0
        %967 = vmatpush1.msra.mxu0 0.0
        %968 = vmatprep.subr.mxu0 0.0
        %969 = vmatpush1.msra.mxu0 0.0
        %970 = vmatprep.subr.mxu0 0.0
        %971 = vmatpush1.msra.mxu0 0.0
        %972 = vmatprep.subr.mxu0 0.0
        %973 = vmatpush1.msra.mxu0 0.0
        %974 = vmatprep.subr.mxu0 0.0
        %975 = vmatpush1.msra.mxu0 0.0
        %976 = vmatprep.subr.mxu0 0.0
        %977 = vmatpush1.msra.mxu0 0.0
        %978 = vmatprep.subr.mxu0 0.0
        %979 = vmatpush1.msra.mxu0 0.0
        %980 = vmatprep.subr.mxu0 0.0
        %981 = vmatpush1.msra.mxu0 0.0
        %982 = vmatprep.subr.mxu0 0.0
        %983 = vmatpush1.msra.mxu0 0.0
        %984 = vmatprep.subr.mxu0 0.0
        %985 = vmatpush1.msra.mxu0 0.0
        %986 = vmatprep.subr.mxu0 0.0
        %987 = vmatpush1.msra.mxu0 0.0
        %988 = vmatprep.subr.mxu0 0.0
        %989 = vmatpush1.msra.mxu0 0.0
        %990 = vmatprep.subr.mxu0 0.0
        %991 = vmatpush1.msra.mxu0 0.0
        %992 = vmatprep.subr.mxu0 0.0
        %993 = vmatpush1.msra.mxu0 0.0
        %994 = vmatprep.subr.mxu0 0.0
        %995 = vmatpush1.msra.mxu0 0.0
        %996 = vmatprep.subr.mxu0 0.0
        %997 = vmatpush1.msra.mxu0 0.0
        %998 = vmatprep.subr.mxu0 0.0
        %999 = vmatpush1.msra.mxu0 0.0
        %1000 = vmatprep.subr.mxu0 0.0
        %1001 = vmatpush1.msra.mxu0 0.0
        %1002 = vmatprep.subr.mxu0 0.0
        %1003 = vmatpush1.msra.mxu0 0.0
        %1004 = vmatprep.subr.mxu0 0.0
        %1005 = vmatpush1.msra.mxu0 0.0
        %1006 = vmatprep.mubr.f32.mxu0 0.0
        %v1007 = vand.u32 %v932, 4294901760
        %v1008 = vsub.f32 %v932, %v1007
        %v1009 = vand.u32 %v1008, 4294901760
        %v1010 = vsub.f32 %v1008, %v1009
        %v1011 = vand.u32 %v1010, 4294901760
        %1012 = vmatmul.mubr.f32.gmra.mrb[0].mxu0 %v1011
        %v1013 = vpop.f32.mrb[0].mxu0
        %v1014 = vadd.f32 %v928, %v1013
        %v1015 = vpop.f32.mrb[0].mxu0
        %v1016 = vadd.f32 %v928, %v1015
        %1017 = vdwg.mxu0
        %v1018 = vand.u32 %v916, 4294901760
        %v1019 = vsub.f32 %v916, %v1018
        %v1020 = vand.u32 %v1019, 4294901760
        %v1021 = vsub.f32 %v1019, %v1020
        %v1022 = vand.u32 %v1021, 4294901760
        %1023 = vmatprep.subr.mxu0 %v1022
        %v1024 = vand.u32 %v915, 4294901760
        %v1025 = vsub.f32 %v915, %v1024
        %v1026 = vand.u32 %v1025, 4294901760
        %v1027 = vsub.f32 %v1025, %v1026
        %v1028 = vand.u32 %v1027, 4294901760
        %1029 = vmatpush1.msra.mxu0 %v1028
        %v1030 = vand.u32 %v918, 4294901760
        %v1031 = vsub.f32 %v918, %v1030
        %v1032 = vand.u32 %v1031, 4294901760
        %v1033 = vsub.f32 %v1031, %v1032
        %v1034 = vand.u32 %v1033, 4294901760
        %1035 = vmatprep.subr.mxu0 %v1034
        %v1036 = vand.u32 %v917, 4294901760
        %v1037 = vsub.f32 %v917, %v1036
        %v1038 = vand.u32 %v1037, 4294901760
        %v1039 = vsub.f32 %v1037, %v1038
        %v1040 = vand.u32 %v1039, 4294901760
        %1041 = vmatpush1.msra.mxu0 %v1040
        %v1042 = vand.u32 %v920, 4294901760
        %v1043 = vsub.f32 %v920, %v1042
        %v1044 = vand.u32 %v1043, 4294901760
        %v1045 = vsub.f32 %v1043, %v1044
        %v1046 = vand.u32 %v1045, 4294901760
        %1047 = vmatprep.subr.mxu0 %v1046
        %v1048 = vand.u32 %v919, 4294901760
        %v1049 = vsub.f32 %v919, %v1048
        %v1050 = vand.u32 %v1049, 4294901760
        %v1051 = vsub.f32 %v1049, %v1050
        %v1052 = vand.u32 %v1051, 4294901760
        %1053 = vmatpush1.msra.mxu0 %v1052
        %v1054 = vand.u32 %v922, 4294901760
        %v1055 = vsub.f32 %v922, %v1054
        %v1056 = vand.u32 %v1055, 4294901760
        %v1057 = vsub.f32 %v1055, %v1056
        %v1058 = vand.u32 %v1057, 4294901760
        %1059 = vmatprep.subr.mxu0 %v1058
        %v1060 = vand.u32 %v921, 4294901760
        %v1061 = vsub.f32 %v921, %v1060
        %v1062 = vand.u32 %v1061, 4294901760
        %v1063 = vsub.f32 %v1061, %v1062
        %v1064 = vand.u32 %v1063, 4294901760
        %1065 = vmatpush1.msra.mxu0 %v1064
        %1066 = vmatprep.subr.mxu0 0.0
        %1067 = vmatpush1.msra.mxu0 0.0
        %1068 = vmatprep.subr.mxu0 0.0
        %1069 = vmatpush1.msra.mxu0 0.0
        %1070 = vmatprep.subr.mxu0 0.0
        %1071 = vmatpush1.msra.mxu0 0.0
        %1072 = vmatprep.subr.mxu0 0.0
        %1073 = vmatpush1.msra.mxu0 0.0
        %1074 = vmatprep.subr.mxu0 0.0
        %1075 = vmatpush1.msra.mxu0 0.0
        %1076 = vmatprep.subr.mxu0 0.0
        %1077 = vmatpush1.msra.mxu0 0.0
        %1078 = vmatprep.subr.mxu0 0.0
        %1079 = vmatpush1.msra.mxu0 0.0
        %1080 = vmatprep.subr.mxu0 0.0
        %1081 = vmatpush1.msra.mxu0 0.0
        %1082 = vmatprep.subr.mxu0 0.0
        %1083 = vmatpush1.msra.mxu0 0.0
        %1084 = vmatprep.subr.mxu0 0.0
        %1085 = vmatpush1.msra.mxu0 0.0
        %1086 = vmatprep.subr.mxu0 0.0
        %1087 = vmatpush1.msra.mxu0 0.0
        %1088 = vmatprep.subr.mxu0 0.0
        %1089 = vmatpush1.msra.mxu0 0.0
        %1090 = vmatprep.subr.mxu0 0.0
        %1091 = vmatpush1.msra.mxu0 0.0
        %1092 = vmatprep.subr.mxu0 0.0
        %1093 = vmatpush1.msra.mxu0 0.0
        %1094 = vmatprep.subr.mxu0 0.0
        %1095 = vmatpush1.msra.mxu0 0.0
        %1096 = vmatprep.subr.mxu0 0.0
        %1097 = vmatpush1.msra.mxu0 0.0
        %1098 = vmatprep.subr.mxu0 0.0
        %1099 = vmatpush1.msra.mxu0 0.0
        %1100 = vmatprep.subr.mxu0 0.0
        %1101 = vmatpush1.msra.mxu0 0.0
        %1102 = vmatprep.subr.mxu0 0.0
        %1103 = vmatpush1.msra.mxu0 0.0
        %1104 = vmatprep.subr.mxu0 0.0
        %1105 = vmatpush1.msra.mxu0 0.0
        %1106 = vmatprep.subr.mxu0 0.0
        %1107 = vmatpush1.msra.mxu0 0.0
        %1108 = vmatprep.subr.mxu0 0.0
        %1109 = vmatpush1.msra.mxu0 0.0
        %1110 = vmatprep.subr.mxu0 0.0
        %1111 = vmatpush1.msra.mxu0 0.0
        %1112 = vmatprep.subr.mxu0 0.0
        %1113 = vmatpush1.msra.mxu0 0.0
        %1114 = vmatprep.subr.mxu0 0.0
        %1115 = vmatpush1.msra.mxu0 0.0
        %1116 = vmatprep.subr.mxu0 0.0
        %1117 = vmatpush1.msra.mxu0 0.0
        %1118 = vmatprep.subr.mxu0 0.0
        %1119 = vmatpush1.msra.mxu0 0.0
        %1120 = vmatprep.subr.mxu0 0.0
        %1121 = vmatpush1.msra.mxu0 0.0
        %1122 = vmatprep.mubr.f32.mxu0 0.0
        %v1123 = vand.u32 %v932, 4294901760
        %1124 = vmatmul.mubr.f32.gmra.mrb[0].mxu0 %v1123
        %v1125 = vpop.f32.mrb[0].mxu0
        %v1126 = vadd.f32 %v1014, %v1125
        %v1127 = vpop.f32.mrb[0].mxu0
        %v1128 = vadd.f32 %v1016, %v1127
        %1129 = vdwg.mxu0
        %v1130 = vand.u32 %v916, 4294901760
        %v1131 = vsub.f32 %v916, %v1130
        %1132 = vmatprep.subr.mxu0 %v1131
        %v1133 = vand.u32 %v915, 4294901760
        %v1134 = vsub.f32 %v915, %v1133
        %1135 = vmatpush1.msra.mxu0 %v1134
        %v1136 = vand.u32 %v918, 4294901760
        %v1137 = vsub.f32 %v918, %v1136
        %1138 = vmatprep.subr.mxu0 %v1137
        %v1139 = vand.u32 %v917, 4294901760
        %v1140 = vsub.f32 %v917, %v1139
        %1141 = vmatpush1.msra.mxu0 %v1140
        %v1142 = vand.u32 %v920, 4294901760
        %v1143 = vsub.f32 %v920, %v1142
        %1144 = vmatprep.subr.mxu0 %v1143
        %v1145 = vand.u32 %v919, 4294901760
        %v1146 = vsub.f32 %v919, %v1145
        %1147 = vmatpush1.msra.mxu0 %v1146
        %v1148 = vand.u32 %v922, 4294901760
        %v1149 = vsub.f32 %v922, %v1148
        %1150 = vmatprep.subr.mxu0 %v1149
        %v1151 = vand.u32 %v921, 4294901760
        %v1152 = vsub.f32 %v921, %v1151
        %1153 = vmatpush1.msra.mxu0 %v1152
        %1154 = vmatprep.subr.mxu0 0.0
        %1155 = vmatpush1.msra.mxu0 0.0
        %1156 = vmatprep.subr.mxu0 0.0
        %1157 = vmatpush1.msra.mxu0 0.0
        %1158 = vmatprep.subr.mxu0 0.0
        %1159 = vmatpush1.msra.mxu0 0.0
        %1160 = vmatprep.subr.mxu0 0.0
        %1161 = vmatpush1.msra.mxu0 0.0
        %1162 = vmatprep.subr.mxu0 0.0
        %1163 = vmatpush1.msra.mxu0 0.0
        %1164 = vmatprep.subr.mxu0 0.0
        %1165 = vmatpush1.msra.mxu0 0.0
        %1166 = vmatprep.subr.mxu0 0.0
        %1167 = vmatpush1.msra.mxu0 0.0
        %1168 = vmatprep.subr.mxu0 0.0
        %1169 = vmatpush1.msra.mxu0 0.0
        %1170 = vmatprep.subr.mxu0 0.0
        %1171 = vmatpush1.msra.mxu0 0.0
        %1172 = vmatprep.subr.mxu0 0.0
        %1173 = vmatpush1.msra.mxu0 0.0
        %1174 = vmatprep.subr.mxu0 0.0
        %1175 = vmatpush1.msra.mxu0 0.0
        %1176 = vmatprep.subr.mxu0 0.0
        %1177 = vmatpush1.msra.mxu0 0.0
        %1178 = vmatprep.subr.mxu0 0.0
        %1179 = vmatpush1.msra.mxu0 0.0
        %1180 = vmatprep.subr.mxu0 0.0
        %1181 = vmatpush1.msra.mxu0 0.0
        %1182 = vmatprep.subr.mxu0 0.0
        %1183 = vmatpush1.msra.mxu0 0.0
        %1184 = vmatprep.subr.mxu0 0.0
        %1185 = vmatpush1.msra.mxu0 0.0
        %1186 = vmatprep.subr.mxu0 0.0
        %1187 = vmatpush1.msra.mxu0 0.0
        %1188 = vmatprep.subr.mxu0 0.0
        %1189 = vmatpush1.msra.mxu0 0.0
        %1190 = vmatprep.subr.mxu0 0.0
        %1191 = vmatpush1.msra.mxu0 0.0
        %1192 = vmatprep.subr.mxu0 0.0
        %1193 = vmatpush1.msra.mxu0 0.0
        %1194 = vmatprep.subr.mxu0 0.0
        %1195 = vmatpush1.msra.mxu0 0.0
        %1196 = vmatprep.subr.mxu0 0.0
        %1197 = vmatpush1.msra.mxu0 0.0
        %1198 = vmatprep.subr.mxu0 0.0
        %1199 = vmatpush1.msra.mxu0 0.0
        %1200 = vmatprep.subr.mxu0 0.0
        %1201 = vmatpush1.msra.mxu0 0.0
        %1202 = vmatprep.subr.mxu0 0.0
        %1203 = vmatpush1.msra.mxu0 0.0
        %1204 = vmatprep.subr.mxu0 0.0
        %1205 = vmatpush1.msra.mxu0 0.0
        %1206 = vmatprep.subr.mxu0 0.0
        %1207 = vmatpush1.msra.mxu0 0.0
        %1208 = vmatprep.subr.mxu0 0.0
        %1209 = vmatpush1.msra.mxu0 0.0
        %1210 = vmatprep.mubr.f32.mxu0 0.0
        %v1211 = vand.u32 %v932, 4294901760
        %v1212 = vsub.f32 %v932, %v1211
        %1213 = vmatmul.mubr.f32.gmra.mrb[0].mxu0 %v1212
        %v1214 = vpop.f32.mrb[0].mxu0
        %v1215 = vadd.f32 %v1126, %v1214
        %v1216 = vpop.f32.mrb[0].mxu0
        %v1217 = vadd.f32 %v1128, %v1216
        %1218 = vdwg.mxu0
        %v1219 = vand.u32 %v916, 4294901760
        %1220 = vmatprep.subr.mxu0 %v1219
        %v1221 = vand.u32 %v915, 4294901760
        %1222 = vmatpush1.msra.mxu0 %v1221
        %v1223 = vand.u32 %v918, 4294901760
        %1224 = vmatprep.subr.mxu0 %v1223
        %v1225 = vand.u32 %v917, 4294901760
        %1226 = vmatpush1.msra.mxu0 %v1225
        %v1227 = vand.u32 %v920, 4294901760
        %1228 = vmatprep.subr.mxu0 %v1227
        %v1229 = vand.u32 %v919, 4294901760
        %1230 = vmatpush1.msra.mxu0 %v1229
        %v1231 = vand.u32 %v922, 4294901760
        %1232 = vmatprep.subr.mxu0 %v1231
        %v1233 = vand.u32 %v921, 4294901760
        %1234 = vmatpush1.msra.mxu0 %v1233
        %1235 = vmatprep.subr.mxu0 0.0
        %1236 = vmatpush1.msra.mxu0 0.0
        %1237 = vmatprep.subr.mxu0 0.0
        %1238 = vmatpush1.msra.mxu0 0.0
        %1239 = vmatprep.subr.mxu0 0.0
        %1240 = vmatpush1.msra.mxu0 0.0
        %1241 = vmatprep.subr.mxu0 0.0
        %1242 = vmatpush1.msra.mxu0 0.0
        %1243 = vmatprep.subr.mxu0 0.0
        %1244 = vmatpush1.msra.mxu0 0.0
        %1245 = vmatprep.subr.mxu0 0.0
        %1246 = vmatpush1.msra.mxu0 0.0
        %1247 = vmatprep.subr.mxu0 0.0
        %1248 = vmatpush1.msra.mxu0 0.0
        %1249 = vmatprep.subr.mxu0 0.0
        %1250 = vmatpush1.msra.mxu0 0.0
        %1251 = vmatprep.subr.mxu0 0.0
        %1252 = vmatpush1.msra.mxu0 0.0
        %1253 = vmatprep.subr.mxu0 0.0
        %1254 = vmatpush1.msra.mxu0 0.0
        %1255 = vmatprep.subr.mxu0 0.0
        %1256 = vmatpush1.msra.mxu0 0.0
        %1257 = vmatprep.subr.mxu0 0.0
        %1258 = vmatpush1.msra.mxu0 0.0
        %1259 = vmatprep.subr.mxu0 0.0
        %1260 = vmatpush1.msra.mxu0 0.0
        %1261 = vmatprep.subr.mxu0 0.0
        %1262 = vmatpush1.msra.mxu0 0.0
        %1263 = vmatprep.subr.mxu0 0.0
        %1264 = vmatpush1.msra.mxu0 0.0
        %1265 = vmatprep.subr.mxu0 0.0
        %1266 = vmatpush1.msra.mxu0 0.0
        %1267 = vmatprep.subr.mxu0 0.0
        %1268 = vmatpush1.msra.mxu0 0.0
        %1269 = vmatprep.subr.mxu0 0.0
        %1270 = vmatpush1.msra.mxu0 0.0
        %1271 = vmatprep.subr.mxu0 0.0
        %1272 = vmatpush1.msra.mxu0 0.0
        %1273 = vmatprep.subr.mxu0 0.0
        %1274 = vmatpush1.msra.mxu0 0.0
        %1275 = vmatprep.subr.mxu0 0.0
        %1276 = vmatpush1.msra.mxu0 0.0
        %1277 = vmatprep.subr.mxu0 0.0
        %1278 = vmatpush1.msra.mxu0 0.0
        %1279 = vmatprep.subr.mxu0 0.0
        %1280 = vmatpush1.msra.mxu0 0.0
        %1281 = vmatprep.subr.mxu0 0.0
        %1282 = vmatpush1.msra.mxu0 0.0
        %1283 = vmatprep.subr.mxu0 0.0
        %1284 = vmatpush1.msra.mxu0 0.0
        %1285 = vmatprep.subr.mxu0 0.0
        %1286 = vmatpush1.msra.mxu0 0.0
        %1287 = vmatprep.subr.mxu0 0.0
        %1288 = vmatpush1.msra.mxu0 0.0
        %1289 = vmatprep.subr.mxu0 0.0
        %1290 = vmatpush1.msra.mxu0 0.0
        %1291 = vmatprep.mubr.f32.mxu0 0.0
        %v1292 = vand.u32 %v932, 4294901760
        %v1293 = vsub.f32 %v932, %v1292
        %v1294 = vand.u32 %v1293, 4294901760
        %1295 = vmatmul.mubr.f32.gmra.mrb[0].mxu0 %v1294
        %v1296 = vpop.f32.mrb[0].mxu0
        %v1297 = vadd.f32 %v1215, %v1296
        %v1298 = vpop.f32.mrb[0].mxu0
        %v1299 = vadd.f32 %v1217, %v1298
        %1300 = vdwg.mxu0
        %v1301 = vand.u32 %v916, 4294901760
        %v1302 = vsub.f32 %v916, %v1301
        %v1303 = vand.u32 %v1302, 4294901760
        %1304 = vmatprep.subr.mxu0 %v1303
        %v1305 = vand.u32 %v915, 4294901760
        %v1306 = vsub.f32 %v915, %v1305
        %v1307 = vand.u32 %v1306, 4294901760
        %1308 = vmatpush1.msra.mxu0 %v1307
        %v1309 = vand.u32 %v918, 4294901760
        %v1310 = vsub.f32 %v918, %v1309
        %v1311 = vand.u32 %v1310, 4294901760
        %1312 = vmatprep.subr.mxu0 %v1311
        %v1313 = vand.u32 %v917, 4294901760
        %v1314 = vsub.f32 %v917, %v1313
        %v1315 = vand.u32 %v1314, 4294901760
        %1316 = vmatpush1.msra.mxu0 %v1315
        %v1317 = vand.u32 %v920, 4294901760
        %v1318 = vsub.f32 %v920, %v1317
        %v1319 = vand.u32 %v1318, 4294901760
        %1320 = vmatprep.subr.mxu0 %v1319
        %v1321 = vand.u32 %v919, 4294901760
        %v1322 = vsub.f32 %v919, %v1321
        %v1323 = vand.u32 %v1322, 4294901760
        %1324 = vmatpush1.msra.mxu0 %v1323
        %v1325 = vand.u32 %v922, 4294901760
        %v1326 = vsub.f32 %v922, %v1325
        %v1327 = vand.u32 %v1326, 4294901760
        %1328 = vmatprep.subr.mxu0 %v1327
        %v1329 = vand.u32 %v921, 4294901760
        %v1330 = vsub.f32 %v921, %v1329
        %v1331 = vand.u32 %v1330, 4294901760
        %1332 = vmatpush1.msra.mxu0 %v1331
        %1333 = vmatprep.subr.mxu0 0.0
        %1334 = vmatpush1.msra.mxu0 0.0
        %1335 = vmatprep.subr.mxu0 0.0
        %1336 = vmatpush1.msra.mxu0 0.0
        %1337 = vmatprep.subr.mxu0 0.0
        %1338 = vmatpush1.msra.mxu0 0.0
        %1339 = vmatprep.subr.mxu0 0.0
        %1340 = vmatpush1.msra.mxu0 0.0
        %1341 = vmatprep.subr.mxu0 0.0
        %1342 = vmatpush1.msra.mxu0 0.0
        %1343 = vmatprep.subr.mxu0 0.0
        %1344 = vmatpush1.msra.mxu0 0.0
        %1345 = vmatprep.subr.mxu0 0.0
        %1346 = vmatpush1.msra.mxu0 0.0
        %1347 = vmatprep.subr.mxu0 0.0
        %1348 = vmatpush1.msra.mxu0 0.0
        %1349 = vmatprep.subr.mxu0 0.0
        %1350 = vmatpush1.msra.mxu0 0.0
        %1351 = vmatprep.subr.mxu0 0.0
        %1352 = vmatpush1.msra.mxu0 0.0
        %1353 = vmatprep.subr.mxu0 0.0
        %1354 = vmatpush1.msra.mxu0 0.0
        %1355 = vmatprep.subr.mxu0 0.0
        %1356 = vmatpush1.msra.mxu0 0.0
        %1357 = vmatprep.subr.mxu0 0.0
        %1358 = vmatpush1.msra.mxu0 0.0
        %1359 = vmatprep.subr.mxu0 0.0
        %1360 = vmatpush1.msra.mxu0 0.0
        %1361 = vmatprep.subr.mxu0 0.0
        %1362 = vmatpush1.msra.mxu0 0.0
        %1363 = vmatprep.subr.mxu0 0.0
        %1364 = vmatpush1.msra.mxu0 0.0
        %1365 = vmatprep.subr.mxu0 0.0
        %1366 = vmatpush1.msra.mxu0 0.0
        %1367 = vmatprep.subr.mxu0 0.0
        %1368 = vmatpush1.msra.mxu0 0.0
        %1369 = vmatprep.subr.mxu0 0.0
        %1370 = vmatpush1.msra.mxu0 0.0
        %1371 = vmatprep.subr.mxu0 0.0
        %1372 = vmatpush1.msra.mxu0 0.0
        %1373 = vmatprep.subr.mxu0 0.0
        %1374 = vmatpush1.msra.mxu0 0.0
        %1375 = vmatprep.subr.mxu0 0.0
        %1376 = vmatpush1.msra.mxu0 0.0
        %1377 = vmatprep.subr.mxu0 0.0
        %1378 = vmatpush1.msra.mxu0 0.0
        %1379 = vmatprep.subr.mxu0 0.0
        %1380 = vmatpush1.msra.mxu0 0.0
        %1381 = vmatprep.subr.mxu0 0.0
        %1382 = vmatpush1.msra.mxu0 0.0
        %1383 = vmatprep.subr.mxu0 0.0
        %1384 = vmatpush1.msra.mxu0 0.0
        %1385 = vmatprep.subr.mxu0 0.0
        %1386 = vmatpush1.msra.mxu0 0.0
        %1387 = vmatprep.subr.mxu0 0.0
        %1388 = vmatpush1.msra.mxu0 0.0
        %1389 = vmatprep.mubr.f32.mxu0 0.0
        %v1390 = vand.u32 %v932, 4294901760
        %1391 = vmatmul.mubr.f32.gmra.mrb[0].mxu0 %v1390
        %v1392 = vpop.f32.mrb[0].mxu0
        %v1393 = vadd.f32 %v1297, %v1392
        %v1394 = vpop.f32.mrb[0].mxu0
        %v1395 = vadd.f32 %v1299, %v1394
        %1396 = vdwg.mxu0
        %v1397 = vand.u32 %v916, 4294901760
        %1398 = vmatprep.subr.mxu0 %v1397
        %v1399 = vand.u32 %v915, 4294901760
        %1400 = vmatpush1.msra.mxu0 %v1399
        %v1401 = vand.u32 %v918, 4294901760
        %1402 = vmatprep.subr.mxu0 %v1401
        %v1403 = vand.u32 %v917, 4294901760
        %1404 = vmatpush1.msra.mxu0 %v1403
        %v1405 = vand.u32 %v920, 4294901760
        %1406 = vmatprep.subr.mxu0 %v1405
        %v1407 = vand.u32 %v919, 4294901760
        %1408 = vmatpush1.msra.mxu0 %v1407
        %v1409 = vand.u32 %v922, 4294901760
        %1410 = vmatprep.subr.mxu0 %v1409
        %v1411 = vand.u32 %v921, 4294901760
        %1412 = vmatpush1.msra.mxu0 %v1411
        %1413 = vmatprep.subr.mxu0 0.0
        %1414 = vmatpush1.msra.mxu0 0.0
        %1415 = vmatprep.subr.mxu0 0.0
        %1416 = vmatpush1.msra.mxu0 0.0
        %1417 = vmatprep.subr.mxu0 0.0
        %1418 = vmatpush1.msra.mxu0 0.0
        %1419 = vmatprep.subr.mxu0 0.0
        %1420 = vmatpush1.msra.mxu0 0.0
        %1421 = vmatprep.subr.mxu0 0.0
        %1422 = vmatpush1.msra.mxu0 0.0
        %1423 = vmatprep.subr.mxu0 0.0
        %1424 = vmatpush1.msra.mxu0 0.0
        %1425 = vmatprep.subr.mxu0 0.0
        %1426 = vmatpush1.msra.mxu0 0.0
        %1427 = vmatprep.subr.mxu0 0.0
        %1428 = vmatpush1.msra.mxu0 0.0
        %1429 = vmatprep.subr.mxu0 0.0
        %1430 = vmatpush1.msra.mxu0 0.0
        %1431 = vmatprep.subr.mxu0 0.0
        %1432 = vmatpush1.msra.mxu0 0.0
        %1433 = vmatprep.subr.mxu0 0.0
        %1434 = vmatpush1.msra.mxu0 0.0
        %1435 = vmatprep.subr.mxu0 0.0
        %1436 = vmatpush1.msra.mxu0 0.0
        %1437 = vmatprep.subr.mxu0 0.0
        %1438 = vmatpush1.msra.mxu0 0.0
        %1439 = vmatprep.subr.mxu0 0.0
        %1440 = vmatpush1.msra.mxu0 0.0
        %1441 = vmatprep.subr.mxu0 0.0
        %1442 = vmatpush1.msra.mxu0 0.0
        %1443 = vmatprep.subr.mxu0 0.0
        %1444 = vmatpush1.msra.mxu0 0.0
        %1445 = vmatprep.subr.mxu0 0.0
        %1446 = vmatpush1.msra.mxu0 0.0
        %1447 = vmatprep.subr.mxu0 0.0
        %1448 = vmatpush1.msra.mxu0 0.0
        %1449 = vmatprep.subr.mxu0 0.0
        %1450 = vmatpush1.msra.mxu0 0.0
        %1451 = vmatprep.subr.mxu0 0.0
        %1452 = vmatpush1.msra.mxu0 0.0
        %1453 = vmatprep.subr.mxu0 0.0
        %1454 = vmatpush1.msra.mxu0 0.0
        %1455 = vmatprep.subr.mxu0 0.0
        %1456 = vmatpush1.msra.mxu0 0.0
        %1457 = vmatprep.subr.mxu0 0.0
        %1458 = vmatpush1.msra.mxu0 0.0
        %1459 = vmatprep.subr.mxu0 0.0
        %1460 = vmatpush1.msra.mxu0 0.0
        %1461 = vmatprep.subr.mxu0 0.0
        %1462 = vmatpush1.msra.mxu0 0.0
        %1463 = vmatprep.subr.mxu0 0.0
        %1464 = vmatpush1.msra.mxu0 0.0
        %1465 = vmatprep.subr.mxu0 0.0
        %1466 = vmatpush1.msra.mxu0 0.0
        %1467 = vmatprep.subr.mxu0 0.0
        %1468 = vmatpush1.msra.mxu0 0.0
        %1469 = vmatprep.mubr.f32.mxu0 0.0
        %v1470 = vand.u32 %v932, 4294901760
        %1471 = vmatmul.mubr.f32.gmra.mrb[0].mxu0 %v1470
        %v1472 = vpop.f32.mrb[0].mxu0
        %v1473 = vadd.f32 %v1393, %v1472
        %v1474 = vpop.f32.mrb[0].mxu0
        %v1475 = vadd.f32 %v1395, %v1474
        %1476 = vdwg.mxu0
        %v1479 = vcombine.low %v1473, %v1475
        %1481 = vst [vmem:[%s242] sm:$0xff] %v1479
        %s1482 = sand.u32 %s153, 1
        %s1483 = scalar_lea.sflag [#allocation3], %s1482
        %s1484 = sand.u32 %s153, 1
        %s1485 = smul.addr %s1484, 8
        %s1486 = scalar_lea.vmem [#allocation2], %s1485
        // Predicated region
        $region41: #{tpu_custom_call.1} parent=39 // pred_check
          %p1487 = pneg %p163
        $region42: #{tpu_custom_call.1} parent=39 // pred_check_branch
          %1489 = sbr.rel (%p1487) target = $region44
        $region43: #{tpu_custom_call.1} parent=39 // pred_region
          %s1490 = smul.u32 2, %s24
          %s1492 = ssub.s32 128, 128
          %1493 = vsyncadd %s1483, %s1492
          %s1494 = smul.addr %s23, 2
          %s1495 = sadd.s32 %s1490, %s1494
          %s1496 = smul.addr %s1495, 64
          %s1497 = scalar_lea.hbm %s5, %s1496
          %s1499 = sshll.u32 %s1486, 4
          %s1500 = int_to_ptr.vmem [resolvable:$true] %s1499
          %1502 = dma.vmem_to_hbm [thread:$0]  %s1500, 128, %s1497, %s1483
        $region44: #{tpu_custom_call.1} parent=39 // pred_fallthru
          _
      $region40: #{tpu_custom_call.1} parent=5 // pred_fallthru
        _
      %p1503 = scmp.le.s32.totalorder 2, %s14
      // Predicated region
      $region45: #{tpu_custom_call.1} parent=5 // pred_check
        %p1504 = pneg %p1503
      $region46: #{tpu_custom_call.1} parent=5 // pred_check_branch
        %1506 = sbr.rel (%p1504) target = $region48
      $region47: #{tpu_custom_call.1} parent=5 // pred_region
        %s1507 = ssub.s32 %s14, 2
        // Predicated region
        $region49: #{tpu_custom_call.1} parent=47 // pred_check
          %p1508 = pneg %p169
        $region50: #{tpu_custom_call.1} parent=47 // pred_check_branch
          %1510 = sbr.rel (%p1508) target = $region52
        $region51: #{tpu_custom_call.1} parent=47 // pred_region
          %s1511 = sand.u32 %s154, 1
          %s1512 = scalar_lea.sflag [#allocation3], %s1511
          %s1513 = sand.u32 %s154, 1
          %s1514 = smul.addr %s1513, 8
          %s1515 = scalar_lea.vmem [#allocation2], %s1514
          %1516 = dma.done %s1512, 128
        $region52: #{tpu_custom_call.1} parent=47 // pred_fallthru
          _
      $region48: #{tpu_custom_call.1} parent=5 // pred_fallthru
        _
    $region6: #{tpu_custom_call.1} parent=1 // loop_footer
      %s18 = sadd.s32 1, %s14
    $region7: #{tpu_custom_call.1} parent=1 // loop_footer_branch
      %13 = sbr.rel target = $region3
    $region8: #{tpu_custom_call.1} parent=1 // loop_exit
      _
    %1517 = vsyncpa [#allocation3], 1
    %s1518 = scalar_lea.sflag [#allocation3], 1
    %1519 = vsyncpa %s1518, 1

</llo_original>
